<compile_context>
chip_gen: v7x
topology: tpu7x:2x2x1
jax: 0.10.0
libtpu: 0.0.40
codegen_flags: <defaults>
</compile_context>

<pallas_src>
import jax
import jax.numpy as jnp
from jax.experimental import pallas as pl
from jax.experimental.pallas import tpu as pltpu


def _critic_z_kernel(x_ref, w_ref, b_ref, o_ref):
    # x_ref: (TB, IN) VMEM tile, w_ref: (1, IN) VMEM (resident),
    # b_ref: (1,) SMEM scalar,   o_ref: (1, TB) VMEM lane-dense output row.
    x = x_ref[...]
    w = w_ref[...]
    # VPU multiply + XLU lane reduction; the MXU stays idle on purpose.
    y = jnp.sum(x * w, axis=-1) + b_ref[0]            # (TB,)
    o_ref[...] = y.reshape(o_ref.shape).astype(o_ref.dtype)


def critic_z_forward(x, weight, bias, *, block_b=512):
    """Pallas forward for CriticZ (nn.Linear(20 -> 1)).

    Args:
      x:      (B, 20) float32
      weight: (1, 20) float32  -- PyTorch nn.Linear layout (out, in); no transpose needed
      bias:   (1,)    float32
      block_b: batch tile size (rounded down to a multiple of 128)
    Returns:
      (B, 1) float32
    """
    B, in_features = x.shape
    out_features = weight.shape[0]

    # NOTE: for tiny B the pallas_call launch/DMA fixed cost dominates; when
    # integrating into a larger graph, let XLA fuse the GEMV instead of
    # dispatching this kernel.  The padding path below keeps tiny B correct.
    tb = max(128, (block_b // 128) * 128)        # lane-dense tile width
    tb = min(tb, pl.cdiv(B, 128) * 128)          # never bigger than padded B
    b_pad = pl.cdiv(B, tb) * tb
    if b_pad != B:
        x = jnp.pad(x, ((0, b_pad - B), (0, 0)))
    num_blocks = b_pad // tb

    out_row = pl.pallas_call(
        _critic_z_kernel,
        out_shape=jax.ShapeDtypeStruct((1, b_pad), jnp.float32),
        grid=(num_blocks,),
        in_specs=[
            pl.BlockSpec((tb, in_features), lambda i: (i, 0)),    # x batch tile
            pl.BlockSpec((1, in_features), lambda i: (0, 0)),     # weight row (resident)
            pl.BlockSpec(memory_space=pltpu.MemorySpace.SMEM),    # bias scalar
        ],
        out_specs=pl.BlockSpec((1, tb), lambda i: (0, i)),        # lane-dense row
        compiler_params=pltpu.CompilerParams(
            dimension_semantics=("parallel",),
        ),
    )(x, weight, bias.reshape(out_features))

    return out_row.reshape(b_pad, out_features)[:B]


if __name__ == "__main__":
    key = jax.random.PRNGKey(0)
    k_x, k_w, k_b, k_x2 = jax.random.split(key, 4)

    IN, OUT = 20, 1
    bound = 1.0 / jnp.sqrt(jnp.float32(IN))
    weight = jax.random.uniform(k_w, (OUT, IN), jnp.float32, -bound, bound)
    bias = jax.random.uniform(k_b, (OUT,), jnp.float32, -bound, bound)

    # Multi-block case: exercises batch tiling / pipelining (grid = 4 blocks).
    B1 = 1024
    x1 = jax.random.normal(k_x, (B1, IN), jnp.float32)
    y1 = critic_z_forward(x1, weight, bias, block_b=256)
    jax.block_until_ready(y1)
    ref1 = x1 @ weight.T + bias
    assert y1.shape == (B1, OUT)
    assert jnp.allclose(y1, ref1, atol=1e-5, rtol=1e-5)

    # Tiny-batch case (pads up to one 128-row tile, then slices back).
    B2 = 8
    x2 = jax.random.normal(k_x2, (B2, IN), jnp.float32)
    y2 = critic_z_forward(x2, weight, bias)
    jax.block_until_ready(y2)
    ref2 = x2 @ weight.T + bias
    assert y2.shape == (B2, OUT)
    assert jnp.allclose(y2, ref2, atol=1e-5, rtol=1e-5)

    print("KERNEL_OK")
</pallas_src>

<mosaic_0001>
module attributes {stable_mosaic.version = 11 : i64} {
  func.func @_critic_z_kernel(%arg0: i32, %arg1: memref<256x20xf32, #tpu.memory_space<vmem>>, %arg2: memref<1x20xf32, #tpu.memory_space<vmem>>, %arg3: memref<1xf32, #tpu.memory_space<smem>>, %arg4: memref<1x256xf32, #tpu.memory_space<vmem>>) attributes {dimension_semantics = [#tpu.dimension_semantics<parallel>], iteration_bounds = array<i64: 4>, scalar_prefetch = 0 : i64, scratch_operands = 0 : i64, tpu.core_type = #tpu.core_type<tc>, window_params = [{transform_indices = @transform_0, window_bounds = array<i64: 256, 20>}, {pipeline_mode = #tpu.pipeline_mode<synchronous>, transform_indices = @transform_1, window_bounds = array<i64: 1, 20>}, {transform_indices = @transform_2, window_bounds = array<i64: 1>}, {transform_indices = @transform_3, window_bounds = array<i64: 1, 256>}]} {
    %c0 = arith.constant 0 : index
    %c0_0 = arith.constant 0 : index
    %0 = vector.load %arg1[%c0, %c0_0] : memref<256x20xf32, #tpu.memory_space<vmem>>, vector<256x20xf32>
    %c0_1 = arith.constant 0 : index
    %c0_2 = arith.constant 0 : index
    %1 = vector.load %arg2[%c0_1, %c0_2] : memref<1x20xf32, #tpu.memory_space<vmem>>, vector<1x20xf32>
    %2 = vector.broadcast %1 : vector<1x20xf32> to vector<256x20xf32>
    %3 = arith.mulf %0, %2 : vector<256x20xf32>
    %cst = arith.constant dense<0.000000e+00> : vector<256xf32>
    %4 = vector.multi_reduction <add>, %3, %cst [1] : vector<256x20xf32> to vector<256xf32>
    %c0_3 = arith.constant 0 : index
    %5 = memref.load %arg3[%c0_3] : memref<1xf32, #tpu.memory_space<smem>>
    %6 = vector.broadcast %5 : f32 to vector<256xf32>
    %7 = arith.addf %4, %6 : vector<256xf32>
    %8 = vector.shape_cast %7 : vector<256xf32> to vector<1x256xf32>
    %c0_4 = arith.constant 0 : index
    %c0_5 = arith.constant 0 : index
    %9 = vector.load %arg4[%c0_4, %c0_5] : memref<1x256xf32, #tpu.memory_space<vmem>>, vector<1x256xf32>
    tpu.vector_store %arg4[%c0_4, %c0_5], %8 {strides = array<i32>} : memref<1x256xf32, #tpu.memory_space<vmem>>, vector<1x256xf32>,
    return
  }
  func.func @transform_0(%arg0: i32) -> (i32, i32) {
    %c0_i32 = arith.constant 0 : i32
    %c0_i32_0 = arith.constant 0 : i32
    return %arg0, %c0_i32 : i32, i32
  }
  func.func @transform_1(%arg0: i32) -> (i32, i32) {
    %c0_i32 = arith.constant 0 : i32
    %c0_i32_0 = arith.constant 0 : i32
    %c0_i32_1 = arith.constant 0 : i32
    return %c0_i32, %c0_i32_0 : i32, i32
  }
  func.func @transform_2(%arg0: i32) -> i32 {
    %c0_i32 = arith.constant 0 : i32
    %c0_i32_0 = arith.constant 0 : i32
    return %c0_i32 : i32
  }
  func.func @transform_3(%arg0: i32) -> (i32, i32) {
    %c0_i32 = arith.constant 0 : i32
    %c0_i32_0 = arith.constant 0 : i32
    return %c0_i32, %arg0 : i32, i32
  }
}

</mosaic_0001>

<llo_original>
// kernel: tpu_custom_call.1
$region0: #{tpu_custom_call.1}
  #allocation0 [shape = 'u32[]', space=smem, size = 0x4, offset = 0x4, fixed_abs, tag = 'smem constant byte address 0x4 - core index']
  #allocation1 [shape = 'u32[144,128]{1,0:T(1,128)}', space=vmem, size = 0x12000, scoped, tag = 'internal scratch']
  #allocation2 [shape = 'f32[1]{0:T(128)S(6)}', space=smem, size = 0x200, scoped, tag = 'scoped memory for tpu_custom_call.1']
  %s0 = inlined_call_operand.vmem [shape: f32[1024,20], index: 0, kind: input, shape index: {}]
  %s1 = inlined_call_operand.vmem [shape: f32[1,20], index: 1, kind: input, shape index: {}]
  %s2 = inlined_call_operand.<no memory space> [shape: f32[1], index: 2, kind: input, shape index: {}]
  %s3 = inlined_call_operand.hbm [shape: f32[1,1024], index: 3, kind: output, shape index: {}]
  %s4 = sld [smem:[#allocation0]]
  $region45: #{tpu_custom_call.1} parent=0
    _
  %s6 = ssub.s32 1, %s4
  %s7 = scalar_select 0, %s6, %s4
  %8 = sst [smem:[#allocation2]] %s2
  $region1: #{tpu_custom_call.1} parent=0
    #allocation3 [shape = 'u8[2048]{0}', space=vmem, size = 0x800, scoped, tag = 'output window, operand 0']
    #allocation4 [shape = 's32[2]{0}', space=sflag, size = 0x8, scoped, tag = 'scoped memory for tpu_custom_call.1']
    %9 = vsyncpa [#allocation4], 0
    %s10 = scalar_lea.sflag [#allocation4], 1
    %11 = vsyncpa %s10, 0
    loop: start=0, step=1, limit=6
    $region2: #{tpu_custom_call.1} parent=1 // loop_pre_header
      _
    $region3: #{tpu_custom_call.1} parent=1 // loop_header
      %s13 = sphi 0, %s17
      %p14 = scmp.ge.s32.totalorder %s13, 6
      %s23 = sphi 0, %s25
      %s26 = sphi 0, %s23
      %s27 = sphi 0, %s26
      %s43 = sphi 0, %s27
      %s47 = sphi 0, %s47
      %s49 = sphi 0, %s47
      %s50 = sphi 0, %s49
      %s64 = sphi 0, %s50
      %s68 = sphi 0, %s68
      %s70 = sphi 0, %s68
      %s71 = sphi 0, %s70
      %s85 = sphi 0, %s71
      %s91 = sphi 0, %s93
      %s94 = sphi 0, %s91
      %s95 = sphi 0, %s94
      %s111 = sphi 0, %s95
    $region4: #{tpu_custom_call.1} parent=1 // loop_header_branch
      %16 = sbr.rel (%p14) target = $region8
    $region5: #{tpu_custom_call.1} parent=1 // loop_body
      %s18 = ssub.s32 %s13, 1
      %s19 = ssub.s32 %s13, 2
      %s20 = sadd.s32 %s13, 1
      %s21 = ssub.s32 %s13, %s20
      %p22 = scmp.eq.s32.totalorder %s21, 0
      %s24 = sadd.s32 %s23, 1
      %s25 = scalar_select %p22, %s23, %s24
      %p28 = pneg %p22
      %p29 = scmp.eq.s32.totalorder %s13, 3
      %p30 = por %p28, %p29
      %p31 = scmp.ne.s32.totalorder %s23, %s26
      %p32 = scmp.eq.s32.totalorder %s13, 0
      %p33 = por %p31, %p32
      %p34 = scmp.ne.s32.totalorder %s23, %s26
      %p35 = scmp.eq.s32.totalorder %s18, 3
      %p36 = por %p34, %p35
      %p37 = scmp.ne.s32.totalorder %s26, %s27
      %p38 = scmp.eq.s32.totalorder %s18, 0
      %p39 = por %p37, %p38
      %p40 = scmp.ne.s32.totalorder %s26, %s27
      %p41 = scmp.eq.s32.totalorder %s19, 3
      %p42 = por %p40, %p41
      %p44 = scmp.ne.s32.totalorder %s27, %s43
      %p45 = scmp.eq.s32.totalorder %s19, 0
      %p46 = por %p44, %p45
      %s48 = sadd.s32 %s47, 1
      %p51 = scmp.eq.s32.totalorder %s13, 3
      %p52 = scmp.ne.s32.totalorder %s47, %s49
      %p53 = scmp.eq.s32.totalorder %s13, 0
      %p54 = por %p52, %p53
      %p55 = scmp.ne.s32.totalorder %s47, %s49
      %p56 = scmp.eq.s32.totalorder %s18, 3
      %p57 = por %p55, %p56
      %p58 = scmp.ne.s32.totalorder %s49, %s50
      %p59 = scmp.eq.s32.totalorder %s18, 0
      %p60 = por %p58, %p59
      %p61 = scmp.ne.s32.totalorder %s49, %s50
      %p62 = scmp.eq.s32.totalorder %s19, 3
      %p63 = por %p61, %p62
      %p65 = scmp.ne.s32.totalorder %s50, %s64
      %p66 = scmp.eq.s32.totalorder %s19, 0
      %p67 = por %p65, %p66
      %s69 = sadd.s32 %s68, 1
      %p72 = scmp.eq.s32.totalorder %s13, 3
      %p73 = scmp.ne.s32.totalorder %s68, %s70
      %p74 = scmp.eq.s32.totalorder %s13, 0
      %p75 = por %p73, %p74
      %p76 = scmp.ne.s32.totalorder %s68, %s70
      %p77 = scmp.eq.s32.totalorder %s18, 3
      %p78 = por %p76, %p77
      %p79 = scmp.ne.s32.totalorder %s70, %s71
      %p80 = scmp.eq.s32.totalorder %s18, 0
      %p81 = por %p79, %p80
      %p82 = scmp.ne.s32.totalorder %s70, %s71
      %p83 = scmp.eq.s32.totalorder %s19, 3
      %p84 = por %p82, %p83
      %p86 = scmp.ne.s32.totalorder %s71, %s85
      %p87 = scmp.eq.s32.totalorder %s19, 0
      %p88 = por %p86, %p87
      %s89 = ssub.s32 %s13, %s20
      %p90 = scmp.eq.s32.totalorder %s89, 0
      %s92 = sadd.s32 %s91, 1
      %s93 = scalar_select %p90, %s91, %s92
      %p96 = pneg %p90
      %p97 = scmp.eq.s32.totalorder %s13, 3
      %p98 = por %p96, %p97
      %p99 = scmp.ne.s32.totalorder %s91, %s94
      %p100 = scmp.eq.s32.totalorder %s13, 0
      %p101 = por %p99, %p100
      %p102 = scmp.ne.s32.totalorder %s91, %s94
      %p103 = scmp.eq.s32.totalorder %s18, 3
      %p104 = por %p102, %p103
      %p105 = scmp.ne.s32.totalorder %s94, %s95
      %p106 = scmp.eq.s32.totalorder %s18, 0
      %p107 = por %p105, %p106
      %p108 = scmp.ne.s32.totalorder %s94, %s95
      %p109 = scmp.eq.s32.totalorder %s19, 3
      %p110 = por %p108, %p109
      %p112 = scmp.ne.s32.totalorder %s95, %s111
      %p113 = scmp.eq.s32.totalorder %s19, 0
      %p114 = por %p112, %p113
      %p115 = scmp.le.s32.totalorder 1, %s13
      %p116 = scmp.lt.s32.totalorder %s13, 5
      %p117 = pnand %p115, %p116
      %p118 = pneg %p117
      // Predicated region
      $region9: #{tpu_custom_call.1} parent=5 // pred_check
        _
      $region10: #{tpu_custom_call.1} parent=5 // pred_check_branch
        %120 = sbr.rel (%p117) target = $region12
      $region11: #{tpu_custom_call.1} parent=5 // pred_region
        %s121 = ssub.s32 %s13, 1
        // Predicated region
        $region13: #{tpu_custom_call.1} parent=11 // pred_check
          %p122 = pneg %p60
        $region14: #{tpu_custom_call.1} parent=11 // pred_check_branch
          %124 = sbr.rel (%p122) target = $region16
        $region15: #{tpu_custom_call.1} parent=11 // pred_region
          _
        $region16: #{tpu_custom_call.1} parent=11 // pred_fallthru
          _
        // Predicated region
        $region17: #{tpu_custom_call.1} parent=11 // pred_check
          %p125 = pneg %p81
        $region18: #{tpu_custom_call.1} parent=11 // pred_check_branch
          %127 = sbr.rel (%p125) target = $region20
        $region19: #{tpu_custom_call.1} parent=11 // pred_region
          _
        $region20: #{tpu_custom_call.1} parent=11 // pred_fallthru
          _
      $region12: #{tpu_custom_call.1} parent=5 // pred_fallthru
        _
      %p128 = scmp.lt.s32.totalorder %s13, 4
      // Predicated region
      $region21: #{tpu_custom_call.1} parent=5 // pred_check
        %p129 = pneg %p128
      $region22: #{tpu_custom_call.1} parent=5 // pred_check_branch
        %131 = sbr.rel (%p129) target = $region24
      $region23: #{tpu_custom_call.1} parent=5 // pred_region
        // Predicated region
        $region25: #{tpu_custom_call.1} parent=23 // pred_check
          %p132 = pneg %p33
        $region26: #{tpu_custom_call.1} parent=23 // pred_check_branch
          %134 = sbr.rel (%p132) target = $region28
        $region27: #{tpu_custom_call.1} parent=23 // pred_region
          %s135 = smul.u32 32, %s13
          %p136 = scmp.lt.s32.totalorder %s135, 127
          %s137 = scalar_select %p136, %s135, 127
          %s138 = smul.addr %s137, 8
          %s139 = scalar_lea.vmem %s0, %s138
          %s140 = smul.u32 32, %s13
        $region28: #{tpu_custom_call.1} parent=23 // pred_fallthru
          _
      $region24: #{tpu_custom_call.1} parent=5 // pred_fallthru
        _
      %p141 = scmp.le.s32.totalorder 1, %s13
      %p142 = scmp.lt.s32.totalorder %s13, 5
      %p143 = pnand %p141, %p142
      %p144 = pneg %p143
      // Predicated region
      $region29: #{tpu_custom_call.1} parent=5 // pred_check
        _
      $region30: #{tpu_custom_call.1} parent=5 // pred_check_branch
        %146 = sbr.rel (%p143) target = $region32
      $region31: #{tpu_custom_call.1} parent=5 // pred_region
        %s147 = ssub.s32 %s13, 1
        %s148 = smul.u32 32, %s18
        %p149 = scmp.lt.s32.totalorder %s148, 127
        %s150 = scalar_select %p149, %s148, 127
        %s151 = smul.addr %s150, 8
        %s152 = scalar_lea.vmem %s0, %s151
        %p153 = pneg %p39
        %p154 = pneg %p36
        %p155 = pneg %p60
        %p156 = pneg %p57
        %p157 = pneg %p81
        %p158 = pneg %p78
        %p159 = pneg %p107
        %p160 = pneg %p104
        %s161 = sand.u32 %s94, 1
        %s162 = scalar_lea.sflag [#allocation4], %s161
        %s163 = sand.u32 %s94, 1
        %s164 = smul.addr %s163, 2
        %s165 = scalar_lea.vmem [#allocation3], %s164
        %s166 = smul.u32 32, %s18
        %p167 = scmp.lt.s32.totalorder %s166, 127
        %s168 = scalar_select %p167, %s166, 127
        %s169 = smul.addr %s168, 8
        %s170 = scalar_lea.vmem %s0, %s169
        %s171 = smul.u32 32, %s18
        %s172 = smul.u32 2, %s18
        %v173 = vld [vmem:[%s170] sm:$0xff]
        %v174 = vld [vmem:[%s170 + $0x8] sm:$0xff]
        %v175 = vld [vmem:[%s170 + $0x10] sm:$0xff]
        %v176 = vld [vmem:[%s170 + $0x18] sm:$0xff]
        %v177 = vld [vmem:[%s170 + $0x20] sm:$0xff]
        %v178 = vld [vmem:[%s170 + $0x28] sm:$0xff]
        %v179 = vld [vmem:[%s170 + $0x30] sm:$0xff]
        %v180 = vld [vmem:[%s170 + $0x38] sm:$0xff]
        %v181 = vld [vmem:[%s170 + $0x40] sm:$0xff]
        %v182 = vld [vmem:[%s170 + $0x48] sm:$0xff]
        %v183 = vld [vmem:[%s170 + $0x50] sm:$0xff]
        %v184 = vld [vmem:[%s170 + $0x58] sm:$0xff]
        %v185 = vld [vmem:[%s170 + $0x60] sm:$0xff]
        %v186 = vld [vmem:[%s170 + $0x68] sm:$0xff]
        %v187 = vld [vmem:[%s170 + $0x70] sm:$0xff]
        %v188 = vld [vmem:[%s170 + $0x78] sm:$0xff]
        %v189 = vld [vmem:[%s170 + $0x80] sm:$0xff]
        %v190 = vld [vmem:[%s170 + $0x88] sm:$0xff]
        %v191 = vld [vmem:[%s170 + $0x90] sm:$0xff]
        %v192 = vld [vmem:[%s170 + $0x98] sm:$0xff]
        %v193 = vld [vmem:[%s170 + $0xa0] sm:$0xff]
        %v194 = vld [vmem:[%s170 + $0xa8] sm:$0xff]
        %v195 = vld [vmem:[%s170 + $0xb0] sm:$0xff]
        %v196 = vld [vmem:[%s170 + $0xb8] sm:$0xff]
        %v197 = vld [vmem:[%s170 + $0xc0] sm:$0xff]
        %v198 = vld [vmem:[%s170 + $0xc8] sm:$0xff]
        %v199 = vld [vmem:[%s170 + $0xd0] sm:$0xff]
        %v200 = vld [vmem:[%s170 + $0xd8] sm:$0xff]
        %v201 = vld [vmem:[%s170 + $0xe0] sm:$0xff]
        %v202 = vld [vmem:[%s170 + $0xe8] sm:$0xff]
        %v203 = vld [vmem:[%s170 + $0xf0] sm:$0xff]
        %v204 = vld [vmem:[%s170 + $0xf8] sm:$0xff]
        %v205 = vld [vmem:[%s1] sm:$0x1]
        %v207 = vlaneseq
        %v208 = vshrl.u32 %v207, 7
        %v209 = vsub.s32 0, %v208
        %v210 = vrot.slane %v205, %v209
        %v212 = vmul.f32 %v173, %v210
        %v213 = vmul.f32 %v174, %v210
        %v214 = vmul.f32 %v175, %v210
        %v215 = vmul.f32 %v176, %v210
        %v216 = vmul.f32 %v177, %v210
        %v217 = vmul.f32 %v178, %v210
        %v218 = vmul.f32 %v179, %v210
        %v219 = vmul.f32 %v180, %v210
        %v220 = vmul.f32 %v181, %v210
        %v221 = vmul.f32 %v182, %v210
        %v222 = vmul.f32 %v183, %v210
        %v223 = vmul.f32 %v184, %v210
        %v224 = vmul.f32 %v185, %v210
        %v225 = vmul.f32 %v186, %v210
        %v226 = vmul.f32 %v187, %v210
        %v227 = vmul.f32 %v188, %v210
        %v228 = vmul.f32 %v189, %v210
        %v229 = vmul.f32 %v190, %v210
        %v230 = vmul.f32 %v191, %v210
        %v231 = vmul.f32 %v192, %v210
        %v232 = vmul.f32 %v193, %v210
        %v233 = vmul.f32 %v194, %v210
        %v234 = vmul.f32 %v195, %v210
        %v235 = vmul.f32 %v196, %v210
        %v236 = vmul.f32 %v197, %v210
        %v237 = vmul.f32 %v198, %v210
        %v238 = vmul.f32 %v199, %v210
        %v239 = vmul.f32 %v200, %v210
        %v240 = vmul.f32 %v201, %v210
        %v241 = vmul.f32 %v202, %v210
        %v242 = vmul.f32 %v203, %v210
        %v243 = vmul.f32 %v204, %v210
        %vm244 = vcmask 162816
        %v245 = vsel %vm244, %v212, 0.0
        %246 = vadd.xlane.f32.xlu0 %v245
        %v247 = vpop.xlane.xlu0 %246
        %v248 = vsel %vm244, %v213, 0.0
        %249 = vadd.xlane.f32.xlu0 %v248
        %v250 = vpop.xlane.xlu0 %249
        %v251 = vsel %vm244, %v214, 0.0
        %252 = vadd.xlane.f32.xlu0 %v251
        %v253 = vpop.xlane.xlu0 %252
        %v254 = vsel %vm244, %v215, 0.0
        %255 = vadd.xlane.f32.xlu0 %v254
        %v256 = vpop.xlane.xlu0 %255
        %v257 = vsel %vm244, %v216, 0.0
        %258 = vadd.xlane.f32.xlu0 %v257
        %v259 = vpop.xlane.xlu0 %258
        %v260 = vsel %vm244, %v217, 0.0
        %261 = vadd.xlane.f32.xlu0 %v260
        %v262 = vpop.xlane.xlu0 %261
        %v263 = vsel %vm244, %v218, 0.0
        %264 = vadd.xlane.f32.xlu0 %v263
        %v265 = vpop.xlane.xlu0 %264
        %v266 = vsel %vm244, %v219, 0.0
        %267 = vadd.xlane.f32.xlu0 %v266
        %v268 = vpop.xlane.xlu0 %267
        %v269 = vsel %vm244, %v220, 0.0
        %270 = vadd.xlane.f32.xlu0 %v269
        %v271 = vpop.xlane.xlu0 %270
        %v272 = vsel %vm244, %v221, 0.0
        %273 = vadd.xlane.f32.xlu0 %v272
        %v274 = vpop.xlane.xlu0 %273
        %v275 = vsel %vm244, %v222, 0.0
        %276 = vadd.xlane.f32.xlu0 %v275
        %v277 = vpop.xlane.xlu0 %276
        %v278 = vsel %vm244, %v223, 0.0
        %279 = vadd.xlane.f32.xlu0 %v278
        %v280 = vpop.xlane.xlu0 %279
        %v281 = vsel %vm244, %v224, 0.0
        %282 = vadd.xlane.f32.xlu0 %v281
        %v283 = vpop.xlane.xlu0 %282
        %v284 = vsel %vm244, %v225, 0.0
        %285 = vadd.xlane.f32.xlu0 %v284
        %v286 = vpop.xlane.xlu0 %285
        %v287 = vsel %vm244, %v226, 0.0
        %288 = vadd.xlane.f32.xlu0 %v287
        %v289 = vpop.xlane.xlu0 %288
        %v290 = vsel %vm244, %v227, 0.0
        %291 = vadd.xlane.f32.xlu0 %v290
        %v292 = vpop.xlane.xlu0 %291
        %v293 = vsel %vm244, %v228, 0.0
        %294 = vadd.xlane.f32.xlu0 %v293
        %v295 = vpop.xlane.xlu0 %294
        %v296 = vsel %vm244, %v229, 0.0
        %297 = vadd.xlane.f32.xlu0 %v296
        %v298 = vpop.xlane.xlu0 %297
        %v299 = vsel %vm244, %v230, 0.0
        %300 = vadd.xlane.f32.xlu0 %v299
        %v301 = vpop.xlane.xlu0 %300
        %v302 = vsel %vm244, %v231, 0.0
        %303 = vadd.xlane.f32.xlu0 %v302
        %v304 = vpop.xlane.xlu0 %303
        %v305 = vsel %vm244, %v232, 0.0
        %306 = vadd.xlane.f32.xlu0 %v305
        %v307 = vpop.xlane.xlu0 %306
        %v308 = vsel %vm244, %v233, 0.0
        %309 = vadd.xlane.f32.xlu0 %v308
        %v310 = vpop.xlane.xlu0 %309
        %v311 = vsel %vm244, %v234, 0.0
        %312 = vadd.xlane.f32.xlu0 %v311
        %v313 = vpop.xlane.xlu0 %312
        %v314 = vsel %vm244, %v235, 0.0
        %315 = vadd.xlane.f32.xlu0 %v314
        %v316 = vpop.xlane.xlu0 %315
        %v317 = vsel %vm244, %v236, 0.0
        %318 = vadd.xlane.f32.xlu0 %v317
        %v319 = vpop.xlane.xlu0 %318
        %v320 = vsel %vm244, %v237, 0.0
        %321 = vadd.xlane.f32.xlu0 %v320
        %v322 = vpop.xlane.xlu0 %321
        %v323 = vsel %vm244, %v238, 0.0
        %324 = vadd.xlane.f32.xlu0 %v323
        %v325 = vpop.xlane.xlu0 %324
        %v326 = vsel %vm244, %v239, 0.0
        %327 = vadd.xlane.f32.xlu0 %v326
        %v328 = vpop.xlane.xlu0 %327
        %v329 = vsel %vm244, %v240, 0.0
        %330 = vadd.xlane.f32.xlu0 %v329
        %v331 = vpop.xlane.xlu0 %330
        %v332 = vsel %vm244, %v241, 0.0
        %333 = vadd.xlane.f32.xlu0 %v332
        %v334 = vpop.xlane.xlu0 %333
        %v335 = vsel %vm244, %v242, 0.0
        %336 = vadd.xlane.f32.xlu0 %v335
        %v337 = vpop.xlane.xlu0 %336
        %v338 = vsel %vm244, %v243, 0.0
        %339 = vadd.xlane.f32.xlu0 %v338
        %v340 = vpop.xlane.xlu0 %339
        %s341 = sld [smem:[#allocation2]]
        %v342 = vstv %s341
        %v343 = vadd.f32 %v247, %v342
        %v344 = vadd.f32 %v250, %v342
        %v345 = vadd.f32 %v253, %v342
        %v346 = vadd.f32 %v256, %v342
        %v347 = vadd.f32 %v259, %v342
        %v348 = vadd.f32 %v262, %v342
        %v349 = vadd.f32 %v265, %v342
        %v350 = vadd.f32 %v268, %v342
        %v351 = vadd.f32 %v271, %v342
        %v352 = vadd.f32 %v274, %v342
        %v353 = vadd.f32 %v277, %v342
        %v354 = vadd.f32 %v280, %v342
        %v355 = vadd.f32 %v283, %v342
        %v356 = vadd.f32 %v286, %v342
        %v357 = vadd.f32 %v289, %v342
        %v358 = vadd.f32 %v292, %v342
        %v359 = vadd.f32 %v295, %v342
        %v360 = vadd.f32 %v298, %v342
        %v361 = vadd.f32 %v301, %v342
        %v362 = vadd.f32 %v304, %v342
        %v363 = vadd.f32 %v307, %v342
        %v364 = vadd.f32 %v310, %v342
        %v365 = vadd.f32 %v313, %v342
        %v366 = vadd.f32 %v316, %v342
        %v367 = vadd.f32 %v319, %v342
        %v368 = vadd.f32 %v322, %v342
        %v369 = vadd.f32 %v325, %v342
        %v370 = vadd.f32 %v328, %v342
        %v371 = vadd.f32 %v331, %v342
        %v372 = vadd.f32 %v334, %v342
        %v373 = vadd.f32 %v337, %v342
        %v374 = vadd.f32 %v340, %v342
        %v407 = vlaneseq
        %v408 = vshrl.u32 %v407, 7
        %v409 = vsub.s32 0, %v408
        %v410 = vrot.slane %v343, %v409
        %v411 = vlaneseq
        %v412 = vshrl.u32 %v411, 7
        %v413 = vsub.s32 1, %v412
        %v414 = vrot.slane %v343, %v413
        %v415 = vlaneseq
        %v416 = vshrl.u32 %v415, 7
        %v417 = vsub.s32 2, %v416
        %v418 = vrot.slane %v343, %v417
        %v419 = vlaneseq
        %v420 = vshrl.u32 %v419, 7
        %v421 = vsub.s32 3, %v420
        %v422 = vrot.slane %v343, %v421
        %v423 = vlaneseq
        %v424 = vshrl.u32 %v423, 7
        %v425 = vsub.s32 4, %v424
        %v426 = vrot.slane %v343, %v425
        %v427 = vlaneseq
        %v428 = vshrl.u32 %v427, 7
        %v429 = vsub.s32 5, %v428
        %v430 = vrot.slane %v343, %v429
        %v431 = vlaneseq
        %v432 = vshrl.u32 %v431, 7
        %v433 = vsub.s32 6, %v432
        %v434 = vrot.slane %v343, %v433
        %v435 = vlaneseq
        %v436 = vshrl.u32 %v435, 7
        %v437 = vsub.s32 7, %v436
        %v438 = vrot.slane %v343, %v437
        %v439 = vlaneseq
        %v440 = vshrl.u32 %v439, 7
        %v441 = vsub.s32 0, %v440
        %v442 = vrot.slane %v344, %v441
        %v443 = vlaneseq
        %v444 = vshrl.u32 %v443, 7
        %v445 = vsub.s32 1, %v444
        %v446 = vrot.slane %v344, %v445
        %v447 = vlaneseq
        %v448 = vshrl.u32 %v447, 7
        %v449 = vsub.s32 2, %v448
        %v450 = vrot.slane %v344, %v449
        %v451 = vlaneseq
        %v452 = vshrl.u32 %v451, 7
        %v453 = vsub.s32 3, %v452
        %v454 = vrot.slane %v344, %v453
        %v455 = vlaneseq
        %v456 = vshrl.u32 %v455, 7
        %v457 = vsub.s32 4, %v456
        %v458 = vrot.slane %v344, %v457
        %v459 = vlaneseq
        %v460 = vshrl.u32 %v459, 7
        %v461 = vsub.s32 5, %v460
        %v462 = vrot.slane %v344, %v461
        %v463 = vlaneseq
        %v464 = vshrl.u32 %v463, 7
        %v465 = vsub.s32 6, %v464
        %v466 = vrot.slane %v344, %v465
        %v467 = vlaneseq
        %v468 = vshrl.u32 %v467, 7
        %v469 = vsub.s32 7, %v468
        %v470 = vrot.slane %v344, %v469
        %v471 = vlaneseq
        %v472 = vshrl.u32 %v471, 7
        %v473 = vsub.s32 0, %v472
        %v474 = vrot.slane %v345, %v473
        %v475 = vlaneseq
        %v476 = vshrl.u32 %v475, 7
        %v477 = vsub.s32 1, %v476
        %v478 = vrot.slane %v345, %v477
        %v479 = vlaneseq
        %v480 = vshrl.u32 %v479, 7
        %v481 = vsub.s32 2, %v480
        %v482 = vrot.slane %v345, %v481
        %v483 = vlaneseq
        %v484 = vshrl.u32 %v483, 7
        %v485 = vsub.s32 3, %v484
        %v486 = vrot.slane %v345, %v485
        %v487 = vlaneseq
        %v488 = vshrl.u32 %v487, 7
        %v489 = vsub.s32 4, %v488
        %v490 = vrot.slane %v345, %v489
        %v491 = vlaneseq
        %v492 = vshrl.u32 %v491, 7
        %v493 = vsub.s32 5, %v492
        %v494 = vrot.slane %v345, %v493
        %v495 = vlaneseq
        %v496 = vshrl.u32 %v495, 7
        %v497 = vsub.s32 6, %v496
        %v498 = vrot.slane %v345, %v497
        %v499 = vlaneseq
        %v500 = vshrl.u32 %v499, 7
        %v501 = vsub.s32 7, %v500
        %v502 = vrot.slane %v345, %v501
        %v503 = vlaneseq
        %v504 = vshrl.u32 %v503, 7
        %v505 = vsub.s32 0, %v504
        %v506 = vrot.slane %v346, %v505
        %v507 = vlaneseq
        %v508 = vshrl.u32 %v507, 7
        %v509 = vsub.s32 1, %v508
        %v510 = vrot.slane %v346, %v509
        %v511 = vlaneseq
        %v512 = vshrl.u32 %v511, 7
        %v513 = vsub.s32 2, %v512
        %v514 = vrot.slane %v346, %v513
        %v515 = vlaneseq
        %v516 = vshrl.u32 %v515, 7
        %v517 = vsub.s32 3, %v516
        %v518 = vrot.slane %v346, %v517
        %v519 = vlaneseq
        %v520 = vshrl.u32 %v519, 7
        %v521 = vsub.s32 4, %v520
        %v522 = vrot.slane %v346, %v521
        %v523 = vlaneseq
        %v524 = vshrl.u32 %v523, 7
        %v525 = vsub.s32 5, %v524
        %v526 = vrot.slane %v346, %v525
        %v527 = vlaneseq
        %v528 = vshrl.u32 %v527, 7
        %v529 = vsub.s32 6, %v528
        %v530 = vrot.slane %v346, %v529
        %v531 = vlaneseq
        %v532 = vshrl.u32 %v531, 7
        %v533 = vsub.s32 7, %v532
        %v534 = vrot.slane %v346, %v533
        %v535 = vlaneseq
        %v536 = vshrl.u32 %v535, 7
        %v537 = vsub.s32 0, %v536
        %v538 = vrot.slane %v347, %v537
        %v539 = vlaneseq
        %v540 = vshrl.u32 %v539, 7
        %v541 = vsub.s32 1, %v540
        %v542 = vrot.slane %v347, %v541
        %v543 = vlaneseq
        %v544 = vshrl.u32 %v543, 7
        %v545 = vsub.s32 2, %v544
        %v546 = vrot.slane %v347, %v545
        %v547 = vlaneseq
        %v548 = vshrl.u32 %v547, 7
        %v549 = vsub.s32 3, %v548
        %v550 = vrot.slane %v347, %v549
        %v551 = vlaneseq
        %v552 = vshrl.u32 %v551, 7
        %v553 = vsub.s32 4, %v552
        %v554 = vrot.slane %v347, %v553
        %v555 = vlaneseq
        %v556 = vshrl.u32 %v555, 7
        %v557 = vsub.s32 5, %v556
        %v558 = vrot.slane %v347, %v557
        %v559 = vlaneseq
        %v560 = vshrl.u32 %v559, 7
        %v561 = vsub.s32 6, %v560
        %v562 = vrot.slane %v347, %v561
        %v563 = vlaneseq
        %v564 = vshrl.u32 %v563, 7
        %v565 = vsub.s32 7, %v564
        %v566 = vrot.slane %v347, %v565
        %v567 = vlaneseq
        %v568 = vshrl.u32 %v567, 7
        %v569 = vsub.s32 0, %v568
        %v570 = vrot.slane %v348, %v569
        %v571 = vlaneseq
        %v572 = vshrl.u32 %v571, 7
        %v573 = vsub.s32 1, %v572
        %v574 = vrot.slane %v348, %v573
        %v575 = vlaneseq
        %v576 = vshrl.u32 %v575, 7
        %v577 = vsub.s32 2, %v576
        %v578 = vrot.slane %v348, %v577
        %v579 = vlaneseq
        %v580 = vshrl.u32 %v579, 7
        %v581 = vsub.s32 3, %v580
        %v582 = vrot.slane %v348, %v581
        %v583 = vlaneseq
        %v584 = vshrl.u32 %v583, 7
        %v585 = vsub.s32 4, %v584
        %v586 = vrot.slane %v348, %v585
        %v587 = vlaneseq
        %v588 = vshrl.u32 %v587, 7
        %v589 = vsub.s32 5, %v588
        %v590 = vrot.slane %v348, %v589
        %v591 = vlaneseq
        %v592 = vshrl.u32 %v591, 7
        %v593 = vsub.s32 6, %v592
        %v594 = vrot.slane %v348, %v593
        %v595 = vlaneseq
        %v596 = vshrl.u32 %v595, 7
        %v597 = vsub.s32 7, %v596
        %v598 = vrot.slane %v348, %v597
        %v599 = vlaneseq
        %v600 = vshrl.u32 %v599, 7
        %v601 = vsub.s32 0, %v600
        %v602 = vrot.slane %v349, %v601
        %v603 = vlaneseq
        %v604 = vshrl.u32 %v603, 7
        %v605 = vsub.s32 1, %v604
        %v606 = vrot.slane %v349, %v605
        %v607 = vlaneseq
        %v608 = vshrl.u32 %v607, 7
        %v609 = vsub.s32 2, %v608
        %v610 = vrot.slane %v349, %v609
        %v611 = vlaneseq
        %v612 = vshrl.u32 %v611, 7
        %v613 = vsub.s32 3, %v612
        %v614 = vrot.slane %v349, %v613
        %v615 = vlaneseq
        %v616 = vshrl.u32 %v615, 7
        %v617 = vsub.s32 4, %v616
        %v618 = vrot.slane %v349, %v617
        %v619 = vlaneseq
        %v620 = vshrl.u32 %v619, 7
        %v621 = vsub.s32 5, %v620
        %v622 = vrot.slane %v349, %v621
        %v623 = vlaneseq
        %v624 = vshrl.u32 %v623, 7
        %v625 = vsub.s32 6, %v624
        %v626 = vrot.slane %v349, %v625
        %v627 = vlaneseq
        %v628 = vshrl.u32 %v627, 7
        %v629 = vsub.s32 7, %v628
        %v630 = vrot.slane %v349, %v629
        %v631 = vlaneseq
        %v632 = vshrl.u32 %v631, 7
        %v633 = vsub.s32 0, %v632
        %v634 = vrot.slane %v350, %v633
        %v635 = vlaneseq
        %v636 = vshrl.u32 %v635, 7
        %v637 = vsub.s32 1, %v636
        %v638 = vrot.slane %v350, %v637
        %v639 = vlaneseq
        %v640 = vshrl.u32 %v639, 7
        %v641 = vsub.s32 2, %v640
        %v642 = vrot.slane %v350, %v641
        %v643 = vlaneseq
        %v644 = vshrl.u32 %v643, 7
        %v645 = vsub.s32 3, %v644
        %v646 = vrot.slane %v350, %v645
        %v647 = vlaneseq
        %v648 = vshrl.u32 %v647, 7
        %v649 = vsub.s32 4, %v648
        %v650 = vrot.slane %v350, %v649
        %v651 = vlaneseq
        %v652 = vshrl.u32 %v651, 7
        %v653 = vsub.s32 5, %v652
        %v654 = vrot.slane %v350, %v653
        %v655 = vlaneseq
        %v656 = vshrl.u32 %v655, 7
        %v657 = vsub.s32 6, %v656
        %v658 = vrot.slane %v350, %v657
        %v659 = vlaneseq
        %v660 = vshrl.u32 %v659, 7
        %v661 = vsub.s32 7, %v660
        %v662 = vrot.slane %v350, %v661
        %v663 = vlaneseq
        %v664 = vshrl.u32 %v663, 7
        %v665 = vsub.s32 0, %v664
        %v666 = vrot.slane %v351, %v665
        %v667 = vlaneseq
        %v668 = vshrl.u32 %v667, 7
        %v669 = vsub.s32 1, %v668
        %v670 = vrot.slane %v351, %v669
        %v671 = vlaneseq
        %v672 = vshrl.u32 %v671, 7
        %v673 = vsub.s32 2, %v672
        %v674 = vrot.slane %v351, %v673
        %v675 = vlaneseq
        %v676 = vshrl.u32 %v675, 7
        %v677 = vsub.s32 3, %v676
        %v678 = vrot.slane %v351, %v677
        %v679 = vlaneseq
        %v680 = vshrl.u32 %v679, 7
        %v681 = vsub.s32 4, %v680
        %v682 = vrot.slane %v351, %v681
        %v683 = vlaneseq
        %v684 = vshrl.u32 %v683, 7
        %v685 = vsub.s32 5, %v684
        %v686 = vrot.slane %v351, %v685
        %v687 = vlaneseq
        %v688 = vshrl.u32 %v687, 7
        %v689 = vsub.s32 6, %v688
        %v690 = vrot.slane %v351, %v689
        %v691 = vlaneseq
        %v692 = vshrl.u32 %v691, 7
        %v693 = vsub.s32 7, %v692
        %v694 = vrot.slane %v351, %v693
        %v695 = vlaneseq
        %v696 = vshrl.u32 %v695, 7
        %v697 = vsub.s32 0, %v696
        %v698 = vrot.slane %v352, %v697
        %v699 = vlaneseq
        %v700 = vshrl.u32 %v699, 7
        %v701 = vsub.s32 1, %v700
        %v702 = vrot.slane %v352, %v701
        %v703 = vlaneseq
        %v704 = vshrl.u32 %v703, 7
        %v705 = vsub.s32 2, %v704
        %v706 = vrot.slane %v352, %v705
        %v707 = vlaneseq
        %v708 = vshrl.u32 %v707, 7
        %v709 = vsub.s32 3, %v708
        %v710 = vrot.slane %v352, %v709
        %v711 = vlaneseq
        %v712 = vshrl.u32 %v711, 7
        %v713 = vsub.s32 4, %v712
        %v714 = vrot.slane %v352, %v713
        %v715 = vlaneseq
        %v716 = vshrl.u32 %v715, 7
        %v717 = vsub.s32 5, %v716
        %v718 = vrot.slane %v352, %v717
        %v719 = vlaneseq
        %v720 = vshrl.u32 %v719, 7
        %v721 = vsub.s32 6, %v720
        %v722 = vrot.slane %v352, %v721
        %v723 = vlaneseq
        %v724 = vshrl.u32 %v723, 7
        %v725 = vsub.s32 7, %v724
        %v726 = vrot.slane %v352, %v725
        %v727 = vlaneseq
        %v728 = vshrl.u32 %v727, 7
        %v729 = vsub.s32 0, %v728
        %v730 = vrot.slane %v353, %v729
        %v731 = vlaneseq
        %v732 = vshrl.u32 %v731, 7
        %v733 = vsub.s32 1, %v732
        %v734 = vrot.slane %v353, %v733
        %v735 = vlaneseq
        %v736 = vshrl.u32 %v735, 7
        %v737 = vsub.s32 2, %v736
        %v738 = vrot.slane %v353, %v737
        %v739 = vlaneseq
        %v740 = vshrl.u32 %v739, 7
        %v741 = vsub.s32 3, %v740
        %v742 = vrot.slane %v353, %v741
        %v743 = vlaneseq
        %v744 = vshrl.u32 %v743, 7
        %v745 = vsub.s32 4, %v744
        %v746 = vrot.slane %v353, %v745
        %v747 = vlaneseq
        %v748 = vshrl.u32 %v747, 7
        %v749 = vsub.s32 5, %v748
        %v750 = vrot.slane %v353, %v749
        %v751 = vlaneseq
        %v752 = vshrl.u32 %v751, 7
        %v753 = vsub.s32 6, %v752
        %v754 = vrot.slane %v353, %v753
        %v755 = vlaneseq
        %v756 = vshrl.u32 %v755, 7
        %v757 = vsub.s32 7, %v756
        %v758 = vrot.slane %v353, %v757
        %v759 = vlaneseq
        %v760 = vshrl.u32 %v759, 7
        %v761 = vsub.s32 0, %v760
        %v762 = vrot.slane %v354, %v761
        %v763 = vlaneseq
        %v764 = vshrl.u32 %v763, 7
        %v765 = vsub.s32 1, %v764
        %v766 = vrot.slane %v354, %v765
        %v767 = vlaneseq
        %v768 = vshrl.u32 %v767, 7
        %v769 = vsub.s32 2, %v768
        %v770 = vrot.slane %v354, %v769
        %v771 = vlaneseq
        %v772 = vshrl.u32 %v771, 7
        %v773 = vsub.s32 3, %v772
        %v774 = vrot.slane %v354, %v773
        %v775 = vlaneseq
        %v776 = vshrl.u32 %v775, 7
        %v777 = vsub.s32 4, %v776
        %v778 = vrot.slane %v354, %v777
        %v779 = vlaneseq
        %v780 = vshrl.u32 %v779, 7
        %v781 = vsub.s32 5, %v780
        %v782 = vrot.slane %v354, %v781
        %v783 = vlaneseq
        %v784 = vshrl.u32 %v783, 7
        %v785 = vsub.s32 6, %v784
        %v786 = vrot.slane %v354, %v785
        %v787 = vlaneseq
        %v788 = vshrl.u32 %v787, 7
        %v789 = vsub.s32 7, %v788
        %v790 = vrot.slane %v354, %v789
        %v791 = vlaneseq
        %v792 = vshrl.u32 %v791, 7
        %v793 = vsub.s32 0, %v792
        %v794 = vrot.slane %v355, %v793
        %v795 = vlaneseq
        %v796 = vshrl.u32 %v795, 7
        %v797 = vsub.s32 1, %v796
        %v798 = vrot.slane %v355, %v797
        %v799 = vlaneseq
        %v800 = vshrl.u32 %v799, 7
        %v801 = vsub.s32 2, %v800
        %v802 = vrot.slane %v355, %v801
        %v803 = vlaneseq
        %v804 = vshrl.u32 %v803, 7
        %v805 = vsub.s32 3, %v804
        %v806 = vrot.slane %v355, %v805
        %v807 = vlaneseq
        %v808 = vshrl.u32 %v807, 7
        %v809 = vsub.s32 4, %v808
        %v810 = vrot.slane %v355, %v809
        %v811 = vlaneseq
        %v812 = vshrl.u32 %v811, 7
        %v813 = vsub.s32 5, %v812
        %v814 = vrot.slane %v355, %v813
        %v815 = vlaneseq
        %v816 = vshrl.u32 %v815, 7
        %v817 = vsub.s32 6, %v816
        %v818 = vrot.slane %v355, %v817
        %v819 = vlaneseq
        %v820 = vshrl.u32 %v819, 7
        %v821 = vsub.s32 7, %v820
        %v822 = vrot.slane %v355, %v821
        %v823 = vlaneseq
        %v824 = vshrl.u32 %v823, 7
        %v825 = vsub.s32 0, %v824
        %v826 = vrot.slane %v356, %v825
        %v827 = vlaneseq
        %v828 = vshrl.u32 %v827, 7
        %v829 = vsub.s32 1, %v828
        %v830 = vrot.slane %v356, %v829
        %v831 = vlaneseq
        %v832 = vshrl.u32 %v831, 7
        %v833 = vsub.s32 2, %v832
        %v834 = vrot.slane %v356, %v833
        %v835 = vlaneseq
        %v836 = vshrl.u32 %v835, 7
        %v837 = vsub.s32 3, %v836
        %v838 = vrot.slane %v356, %v837
        %v839 = vlaneseq
        %v840 = vshrl.u32 %v839, 7
        %v841 = vsub.s32 4, %v840
        %v842 = vrot.slane %v356, %v841
        %v843 = vlaneseq
        %v844 = vshrl.u32 %v843, 7
        %v845 = vsub.s32 5, %v844
        %v846 = vrot.slane %v356, %v845
        %v847 = vlaneseq
        %v848 = vshrl.u32 %v847, 7
        %v849 = vsub.s32 6, %v848
        %v850 = vrot.slane %v356, %v849
        %v851 = vlaneseq
        %v852 = vshrl.u32 %v851, 7
        %v853 = vsub.s32 7, %v852
        %v854 = vrot.slane %v356, %v853
        %v855 = vlaneseq
        %v856 = vshrl.u32 %v855, 7
        %v857 = vsub.s32 0, %v856
        %v858 = vrot.slane %v357, %v857
        %v859 = vlaneseq
        %v860 = vshrl.u32 %v859, 7
        %v861 = vsub.s32 1, %v860
        %v862 = vrot.slane %v357, %v861
        %v863 = vlaneseq
        %v864 = vshrl.u32 %v863, 7
        %v865 = vsub.s32 2, %v864
        %v866 = vrot.slane %v357, %v865
        %v867 = vlaneseq
        %v868 = vshrl.u32 %v867, 7
        %v869 = vsub.s32 3, %v868
        %v870 = vrot.slane %v357, %v869
        %v871 = vlaneseq
        %v872 = vshrl.u32 %v871, 7
        %v873 = vsub.s32 4, %v872
        %v874 = vrot.slane %v357, %v873
        %v875 = vlaneseq
        %v876 = vshrl.u32 %v875, 7
        %v877 = vsub.s32 5, %v876
        %v878 = vrot.slane %v357, %v877
        %v879 = vlaneseq
        %v880 = vshrl.u32 %v879, 7
        %v881 = vsub.s32 6, %v880
        %v882 = vrot.slane %v357, %v881
        %v883 = vlaneseq
        %v884 = vshrl.u32 %v883, 7
        %v885 = vsub.s32 7, %v884
        %v886 = vrot.slane %v357, %v885
        %v887 = vlaneseq
        %v888 = vshrl.u32 %v887, 7
        %v889 = vsub.s32 0, %v888
        %v890 = vrot.slane %v358, %v889
        %v891 = vlaneseq
        %v892 = vshrl.u32 %v891, 7
        %v893 = vsub.s32 1, %v892
        %v894 = vrot.slane %v358, %v893
        %v895 = vlaneseq
        %v896 = vshrl.u32 %v895, 7
        %v897 = vsub.s32 2, %v896
        %v898 = vrot.slane %v358, %v897
        %v899 = vlaneseq
        %v900 = vshrl.u32 %v899, 7
        %v901 = vsub.s32 3, %v900
        %v902 = vrot.slane %v358, %v901
        %v903 = vlaneseq
        %v904 = vshrl.u32 %v903, 7
        %v905 = vsub.s32 4, %v904
        %v906 = vrot.slane %v358, %v905
        %v907 = vlaneseq
        %v908 = vshrl.u32 %v907, 7
        %v909 = vsub.s32 5, %v908
        %v910 = vrot.slane %v358, %v909
        %v911 = vlaneseq
        %v912 = vshrl.u32 %v911, 7
        %v913 = vsub.s32 6, %v912
        %v914 = vrot.slane %v358, %v913
        %v915 = vlaneseq
        %v916 = vshrl.u32 %v915, 7
        %v917 = vsub.s32 7, %v916
        %v918 = vrot.slane %v358, %v917
        %v919 = vlaneseq
        %v920 = vshrl.u32 %v919, 7
        %v921 = vsub.s32 0, %v920
        %v922 = vrot.slane %v359, %v921
        %v923 = vlaneseq
        %v924 = vshrl.u32 %v923, 7
        %v925 = vsub.s32 1, %v924
        %v926 = vrot.slane %v359, %v925
        %v927 = vlaneseq
        %v928 = vshrl.u32 %v927, 7
        %v929 = vsub.s32 2, %v928
        %v930 = vrot.slane %v359, %v929
        %v931 = vlaneseq
        %v932 = vshrl.u32 %v931, 7
        %v933 = vsub.s32 3, %v932
        %v934 = vrot.slane %v359, %v933
        %v935 = vlaneseq
        %v936 = vshrl.u32 %v935, 7
        %v937 = vsub.s32 4, %v936
        %v938 = vrot.slane %v359, %v937
        %v939 = vlaneseq
        %v940 = vshrl.u32 %v939, 7
        %v941 = vsub.s32 5, %v940
        %v942 = vrot.slane %v359, %v941
        %v943 = vlaneseq
        %v944 = vshrl.u32 %v943, 7
        %v945 = vsub.s32 6, %v944
        %v946 = vrot.slane %v359, %v945
        %v947 = vlaneseq
        %v948 = vshrl.u32 %v947, 7
        %v949 = vsub.s32 7, %v948
        %v950 = vrot.slane %v359, %v949
        %v951 = vlaneseq
        %v952 = vshrl.u32 %v951, 7
        %v953 = vsub.s32 0, %v952
        %v954 = vrot.slane %v360, %v953
        %v955 = vlaneseq
        %v956 = vshrl.u32 %v955, 7
        %v957 = vsub.s32 1, %v956
        %v958 = vrot.slane %v360, %v957
        %v959 = vlaneseq
        %v960 = vshrl.u32 %v959, 7
        %v961 = vsub.s32 2, %v960
        %v962 = vrot.slane %v360, %v961
        %v963 = vlaneseq
        %v964 = vshrl.u32 %v963, 7
        %v965 = vsub.s32 3, %v964
        %v966 = vrot.slane %v360, %v965
        %v967 = vlaneseq
        %v968 = vshrl.u32 %v967, 7
        %v969 = vsub.s32 4, %v968
        %v970 = vrot.slane %v360, %v969
        %v971 = vlaneseq
        %v972 = vshrl.u32 %v971, 7
        %v973 = vsub.s32 5, %v972
        %v974 = vrot.slane %v360, %v973
        %v975 = vlaneseq
        %v976 = vshrl.u32 %v975, 7
        %v977 = vsub.s32 6, %v976
        %v978 = vrot.slane %v360, %v977
        %v979 = vlaneseq
        %v980 = vshrl.u32 %v979, 7
        %v981 = vsub.s32 7, %v980
        %v982 = vrot.slane %v360, %v981
        %v983 = vlaneseq
        %v984 = vshrl.u32 %v983, 7
        %v985 = vsub.s32 0, %v984
        %v986 = vrot.slane %v361, %v985
        %v987 = vlaneseq
        %v988 = vshrl.u32 %v987, 7
        %v989 = vsub.s32 1, %v988
        %v990 = vrot.slane %v361, %v989
        %v991 = vlaneseq
        %v992 = vshrl.u32 %v991, 7
        %v993 = vsub.s32 2, %v992
        %v994 = vrot.slane %v361, %v993
        %v995 = vlaneseq
        %v996 = vshrl.u32 %v995, 7
        %v997 = vsub.s32 3, %v996
        %v998 = vrot.slane %v361, %v997
        %v999 = vlaneseq
        %v1000 = vshrl.u32 %v999, 7
        %v1001 = vsub.s32 4, %v1000
        %v1002 = vrot.slane %v361, %v1001
        %v1003 = vlaneseq
        %v1004 = vshrl.u32 %v1003, 7
        %v1005 = vsub.s32 5, %v1004
        %v1006 = vrot.slane %v361, %v1005
        %v1007 = vlaneseq
        %v1008 = vshrl.u32 %v1007, 7
        %v1009 = vsub.s32 6, %v1008
        %v1010 = vrot.slane %v361, %v1009
        %v1011 = vlaneseq
        %v1012 = vshrl.u32 %v1011, 7
        %v1013 = vsub.s32 7, %v1012
        %v1014 = vrot.slane %v361, %v1013
        %v1015 = vlaneseq
        %v1016 = vshrl.u32 %v1015, 7
        %v1017 = vsub.s32 0, %v1016
        %v1018 = vrot.slane %v362, %v1017
        %v1019 = vlaneseq
        %v1020 = vshrl.u32 %v1019, 7
        %v1021 = vsub.s32 1, %v1020
        %v1022 = vrot.slane %v362, %v1021
        %v1023 = vlaneseq
        %v1024 = vshrl.u32 %v1023, 7
        %v1025 = vsub.s32 2, %v1024
        %v1026 = vrot.slane %v362, %v1025
        %v1027 = vlaneseq
        %v1028 = vshrl.u32 %v1027, 7
        %v1029 = vsub.s32 3, %v1028
        %v1030 = vrot.slane %v362, %v1029
        %v1031 = vlaneseq
        %v1032 = vshrl.u32 %v1031, 7
        %v1033 = vsub.s32 4, %v1032
        %v1034 = vrot.slane %v362, %v1033
        %v1035 = vlaneseq
        %v1036 = vshrl.u32 %v1035, 7
        %v1037 = vsub.s32 5, %v1036
        %v1038 = vrot.slane %v362, %v1037
        %v1039 = vlaneseq
        %v1040 = vshrl.u32 %v1039, 7
        %v1041 = vsub.s32 6, %v1040
        %v1042 = vrot.slane %v362, %v1041
        %v1043 = vlaneseq
        %v1044 = vshrl.u32 %v1043, 7
        %v1045 = vsub.s32 7, %v1044
        %v1046 = vrot.slane %v362, %v1045
        %v1047 = vlaneseq
        %v1048 = vshrl.u32 %v1047, 7
        %v1049 = vsub.s32 0, %v1048
        %v1050 = vrot.slane %v363, %v1049
        %v1051 = vlaneseq
        %v1052 = vshrl.u32 %v1051, 7
        %v1053 = vsub.s32 1, %v1052
        %v1054 = vrot.slane %v363, %v1053
        %v1055 = vlaneseq
        %v1056 = vshrl.u32 %v1055, 7
        %v1057 = vsub.s32 2, %v1056
        %v1058 = vrot.slane %v363, %v1057
        %v1059 = vlaneseq
        %v1060 = vshrl.u32 %v1059, 7
        %v1061 = vsub.s32 3, %v1060
        %v1062 = vrot.slane %v363, %v1061
        %v1063 = vlaneseq
        %v1064 = vshrl.u32 %v1063, 7
        %v1065 = vsub.s32 4, %v1064
        %v1066 = vrot.slane %v363, %v1065
        %v1067 = vlaneseq
        %v1068 = vshrl.u32 %v1067, 7
        %v1069 = vsub.s32 5, %v1068
        %v1070 = vrot.slane %v363, %v1069
        %v1071 = vlaneseq
        %v1072 = vshrl.u32 %v1071, 7
        %v1073 = vsub.s32 6, %v1072
        %v1074 = vrot.slane %v363, %v1073
        %v1075 = vlaneseq
        %v1076 = vshrl.u32 %v1075, 7
        %v1077 = vsub.s32 7, %v1076
        %v1078 = vrot.slane %v363, %v1077
        %v1079 = vlaneseq
        %v1080 = vshrl.u32 %v1079, 7
        %v1081 = vsub.s32 0, %v1080
        %v1082 = vrot.slane %v364, %v1081
        %v1083 = vlaneseq
        %v1084 = vshrl.u32 %v1083, 7
        %v1085 = vsub.s32 1, %v1084
        %v1086 = vrot.slane %v364, %v1085
        %v1087 = vlaneseq
        %v1088 = vshrl.u32 %v1087, 7
        %v1089 = vsub.s32 2, %v1088
        %v1090 = vrot.slane %v364, %v1089
        %v1091 = vlaneseq
        %v1092 = vshrl.u32 %v1091, 7
        %v1093 = vsub.s32 3, %v1092
        %v1094 = vrot.slane %v364, %v1093
        %v1095 = vlaneseq
        %v1096 = vshrl.u32 %v1095, 7
        %v1097 = vsub.s32 4, %v1096
        %v1098 = vrot.slane %v364, %v1097
        %v1099 = vlaneseq
        %v1100 = vshrl.u32 %v1099, 7
        %v1101 = vsub.s32 5, %v1100
        %v1102 = vrot.slane %v364, %v1101
        %v1103 = vlaneseq
        %v1104 = vshrl.u32 %v1103, 7
        %v1105 = vsub.s32 6, %v1104
        %v1106 = vrot.slane %v364, %v1105
        %v1107 = vlaneseq
        %v1108 = vshrl.u32 %v1107, 7
        %v1109 = vsub.s32 7, %v1108
        %v1110 = vrot.slane %v364, %v1109
        %v1111 = vlaneseq
        %v1112 = vshrl.u32 %v1111, 7
        %v1113 = vsub.s32 0, %v1112
        %v1114 = vrot.slane %v365, %v1113
        %v1115 = vlaneseq
        %v1116 = vshrl.u32 %v1115, 7
        %v1117 = vsub.s32 1, %v1116
        %v1118 = vrot.slane %v365, %v1117
        %v1119 = vlaneseq
        %v1120 = vshrl.u32 %v1119, 7
        %v1121 = vsub.s32 2, %v1120
        %v1122 = vrot.slane %v365, %v1121
        %v1123 = vlaneseq
        %v1124 = vshrl.u32 %v1123, 7
        %v1125 = vsub.s32 3, %v1124
        %v1126 = vrot.slane %v365, %v1125
        %v1127 = vlaneseq
        %v1128 = vshrl.u32 %v1127, 7
        %v1129 = vsub.s32 4, %v1128
        %v1130 = vrot.slane %v365, %v1129
        %v1131 = vlaneseq
        %v1132 = vshrl.u32 %v1131, 7
        %v1133 = vsub.s32 5, %v1132
        %v1134 = vrot.slane %v365, %v1133
        %v1135 = vlaneseq
        %v1136 = vshrl.u32 %v1135, 7
        %v1137 = vsub.s32 6, %v1136
        %v1138 = vrot.slane %v365, %v1137
        %v1139 = vlaneseq
        %v1140 = vshrl.u32 %v1139, 7
        %v1141 = vsub.s32 7, %v1140
        %v1142 = vrot.slane %v365, %v1141
        %v1143 = vlaneseq
        %v1144 = vshrl.u32 %v1143, 7
        %v1145 = vsub.s32 0, %v1144
        %v1146 = vrot.slane %v366, %v1145
        %v1147 = vlaneseq
        %v1148 = vshrl.u32 %v1147, 7
        %v1149 = vsub.s32 1, %v1148
        %v1150 = vrot.slane %v366, %v1149
        %v1151 = vlaneseq
        %v1152 = vshrl.u32 %v1151, 7
        %v1153 = vsub.s32 2, %v1152
        %v1154 = vrot.slane %v366, %v1153
        %v1155 = vlaneseq
        %v1156 = vshrl.u32 %v1155, 7
        %v1157 = vsub.s32 3, %v1156
        %v1158 = vrot.slane %v366, %v1157
        %v1159 = vlaneseq
        %v1160 = vshrl.u32 %v1159, 7
        %v1161 = vsub.s32 4, %v1160
        %v1162 = vrot.slane %v366, %v1161
        %v1163 = vlaneseq
        %v1164 = vshrl.u32 %v1163, 7
        %v1165 = vsub.s32 5, %v1164
        %v1166 = vrot.slane %v366, %v1165
        %v1167 = vlaneseq
        %v1168 = vshrl.u32 %v1167, 7
        %v1169 = vsub.s32 6, %v1168
        %v1170 = vrot.slane %v366, %v1169
        %v1171 = vlaneseq
        %v1172 = vshrl.u32 %v1171, 7
        %v1173 = vsub.s32 7, %v1172
        %v1174 = vrot.slane %v366, %v1173
        %v1175 = vlaneseq
        %v1176 = vshrl.u32 %v1175, 7
        %v1177 = vsub.s32 0, %v1176
        %v1178 = vrot.slane %v367, %v1177
        %v1179 = vlaneseq
        %v1180 = vshrl.u32 %v1179, 7
        %v1181 = vsub.s32 1, %v1180
        %v1182 = vrot.slane %v367, %v1181
        %v1183 = vlaneseq
        %v1184 = vshrl.u32 %v1183, 7
        %v1185 = vsub.s32 2, %v1184
        %v1186 = vrot.slane %v367, %v1185
        %v1187 = vlaneseq
        %v1188 = vshrl.u32 %v1187, 7
        %v1189 = vsub.s32 3, %v1188
        %v1190 = vrot.slane %v367, %v1189
        %v1191 = vlaneseq
        %v1192 = vshrl.u32 %v1191, 7
        %v1193 = vsub.s32 4, %v1192
        %v1194 = vrot.slane %v367, %v1193
        %v1195 = vlaneseq
        %v1196 = vshrl.u32 %v1195, 7
        %v1197 = vsub.s32 5, %v1196
        %v1198 = vrot.slane %v367, %v1197
        %v1199 = vlaneseq
        %v1200 = vshrl.u32 %v1199, 7
        %v1201 = vsub.s32 6, %v1200
        %v1202 = vrot.slane %v367, %v1201
        %v1203 = vlaneseq
        %v1204 = vshrl.u32 %v1203, 7
        %v1205 = vsub.s32 7, %v1204
        %v1206 = vrot.slane %v367, %v1205
        %v1207 = vlaneseq
        %v1208 = vshrl.u32 %v1207, 7
        %v1209 = vsub.s32 0, %v1208
        %v1210 = vrot.slane %v368, %v1209
        %v1211 = vlaneseq
        %v1212 = vshrl.u32 %v1211, 7
        %v1213 = vsub.s32 1, %v1212
        %v1214 = vrot.slane %v368, %v1213
        %v1215 = vlaneseq
        %v1216 = vshrl.u32 %v1215, 7
        %v1217 = vsub.s32 2, %v1216
        %v1218 = vrot.slane %v368, %v1217
        %v1219 = vlaneseq
        %v1220 = vshrl.u32 %v1219, 7
        %v1221 = vsub.s32 3, %v1220
        %v1222 = vrot.slane %v368, %v1221
        %v1223 = vlaneseq
        %v1224 = vshrl.u32 %v1223, 7
        %v1225 = vsub.s32 4, %v1224
        %v1226 = vrot.slane %v368, %v1225
        %v1227 = vlaneseq
        %v1228 = vshrl.u32 %v1227, 7
        %v1229 = vsub.s32 5, %v1228
        %v1230 = vrot.slane %v368, %v1229
        %v1231 = vlaneseq
        %v1232 = vshrl.u32 %v1231, 7
        %v1233 = vsub.s32 6, %v1232
        %v1234 = vrot.slane %v368, %v1233
        %v1235 = vlaneseq
        %v1236 = vshrl.u32 %v1235, 7
        %v1237 = vsub.s32 7, %v1236
        %v1238 = vrot.slane %v368, %v1237
        %v1239 = vlaneseq
        %v1240 = vshrl.u32 %v1239, 7
        %v1241 = vsub.s32 0, %v1240
        %v1242 = vrot.slane %v369, %v1241
        %v1243 = vlaneseq
        %v1244 = vshrl.u32 %v1243, 7
        %v1245 = vsub.s32 1, %v1244
        %v1246 = vrot.slane %v369, %v1245
        %v1247 = vlaneseq
        %v1248 = vshrl.u32 %v1247, 7
        %v1249 = vsub.s32 2, %v1248
        %v1250 = vrot.slane %v369, %v1249
        %v1251 = vlaneseq
        %v1252 = vshrl.u32 %v1251, 7
        %v1253 = vsub.s32 3, %v1252
        %v1254 = vrot.slane %v369, %v1253
        %v1255 = vlaneseq
        %v1256 = vshrl.u32 %v1255, 7
        %v1257 = vsub.s32 4, %v1256
        %v1258 = vrot.slane %v369, %v1257
        %v1259 = vlaneseq
        %v1260 = vshrl.u32 %v1259, 7
        %v1261 = vsub.s32 5, %v1260
        %v1262 = vrot.slane %v369, %v1261
        %v1263 = vlaneseq
        %v1264 = vshrl.u32 %v1263, 7
        %v1265 = vsub.s32 6, %v1264
        %v1266 = vrot.slane %v369, %v1265
        %v1267 = vlaneseq
        %v1268 = vshrl.u32 %v1267, 7
        %v1269 = vsub.s32 7, %v1268
        %v1270 = vrot.slane %v369, %v1269
        %v1271 = vlaneseq
        %v1272 = vshrl.u32 %v1271, 7
        %v1273 = vsub.s32 0, %v1272
        %v1274 = vrot.slane %v370, %v1273
        %v1275 = vlaneseq
        %v1276 = vshrl.u32 %v1275, 7
        %v1277 = vsub.s32 1, %v1276
        %v1278 = vrot.slane %v370, %v1277
        %v1279 = vlaneseq
        %v1280 = vshrl.u32 %v1279, 7
        %v1281 = vsub.s32 2, %v1280
        %v1282 = vrot.slane %v370, %v1281
        %v1283 = vlaneseq
        %v1284 = vshrl.u32 %v1283, 7
        %v1285 = vsub.s32 3, %v1284
        %v1286 = vrot.slane %v370, %v1285
        %v1287 = vlaneseq
        %v1288 = vshrl.u32 %v1287, 7
        %v1289 = vsub.s32 4, %v1288
        %v1290 = vrot.slane %v370, %v1289
        %v1291 = vlaneseq
        %v1292 = vshrl.u32 %v1291, 7
        %v1293 = vsub.s32 5, %v1292
        %v1294 = vrot.slane %v370, %v1293
        %v1295 = vlaneseq
        %v1296 = vshrl.u32 %v1295, 7
        %v1297 = vsub.s32 6, %v1296
        %v1298 = vrot.slane %v370, %v1297
        %v1299 = vlaneseq
        %v1300 = vshrl.u32 %v1299, 7
        %v1301 = vsub.s32 7, %v1300
        %v1302 = vrot.slane %v370, %v1301
        %v1303 = vlaneseq
        %v1304 = vshrl.u32 %v1303, 7
        %v1305 = vsub.s32 0, %v1304
        %v1306 = vrot.slane %v371, %v1305
        %v1307 = vlaneseq
        %v1308 = vshrl.u32 %v1307, 7
        %v1309 = vsub.s32 1, %v1308
        %v1310 = vrot.slane %v371, %v1309
        %v1311 = vlaneseq
        %v1312 = vshrl.u32 %v1311, 7
        %v1313 = vsub.s32 2, %v1312
        %v1314 = vrot.slane %v371, %v1313
        %v1315 = vlaneseq
        %v1316 = vshrl.u32 %v1315, 7
        %v1317 = vsub.s32 3, %v1316
        %v1318 = vrot.slane %v371, %v1317
        %v1319 = vlaneseq
        %v1320 = vshrl.u32 %v1319, 7
        %v1321 = vsub.s32 4, %v1320
        %v1322 = vrot.slane %v371, %v1321
        %v1323 = vlaneseq
        %v1324 = vshrl.u32 %v1323, 7
        %v1325 = vsub.s32 5, %v1324
        %v1326 = vrot.slane %v371, %v1325
        %v1327 = vlaneseq
        %v1328 = vshrl.u32 %v1327, 7
        %v1329 = vsub.s32 6, %v1328
        %v1330 = vrot.slane %v371, %v1329
        %v1331 = vlaneseq
        %v1332 = vshrl.u32 %v1331, 7
        %v1333 = vsub.s32 7, %v1332
        %v1334 = vrot.slane %v371, %v1333
        %v1335 = vlaneseq
        %v1336 = vshrl.u32 %v1335, 7
        %v1337 = vsub.s32 0, %v1336
        %v1338 = vrot.slane %v372, %v1337
        %v1339 = vlaneseq
        %v1340 = vshrl.u32 %v1339, 7
        %v1341 = vsub.s32 1, %v1340
        %v1342 = vrot.slane %v372, %v1341
        %v1343 = vlaneseq
        %v1344 = vshrl.u32 %v1343, 7
        %v1345 = vsub.s32 2, %v1344
        %v1346 = vrot.slane %v372, %v1345
        %v1347 = vlaneseq
        %v1348 = vshrl.u32 %v1347, 7
        %v1349 = vsub.s32 3, %v1348
        %v1350 = vrot.slane %v372, %v1349
        %v1351 = vlaneseq
        %v1352 = vshrl.u32 %v1351, 7
        %v1353 = vsub.s32 4, %v1352
        %v1354 = vrot.slane %v372, %v1353
        %v1355 = vlaneseq
        %v1356 = vshrl.u32 %v1355, 7
        %v1357 = vsub.s32 5, %v1356
        %v1358 = vrot.slane %v372, %v1357
        %v1359 = vlaneseq
        %v1360 = vshrl.u32 %v1359, 7
        %v1361 = vsub.s32 6, %v1360
        %v1362 = vrot.slane %v372, %v1361
        %v1363 = vlaneseq
        %v1364 = vshrl.u32 %v1363, 7
        %v1365 = vsub.s32 7, %v1364
        %v1366 = vrot.slane %v372, %v1365
        %v1367 = vlaneseq
        %v1368 = vshrl.u32 %v1367, 7
        %v1369 = vsub.s32 0, %v1368
        %v1370 = vrot.slane %v373, %v1369
        %v1371 = vlaneseq
        %v1372 = vshrl.u32 %v1371, 7
        %v1373 = vsub.s32 1, %v1372
        %v1374 = vrot.slane %v373, %v1373
        %v1375 = vlaneseq
        %v1376 = vshrl.u32 %v1375, 7
        %v1377 = vsub.s32 2, %v1376
        %v1378 = vrot.slane %v373, %v1377
        %v1379 = vlaneseq
        %v1380 = vshrl.u32 %v1379, 7
        %v1381 = vsub.s32 3, %v1380
        %v1382 = vrot.slane %v373, %v1381
        %v1383 = vlaneseq
        %v1384 = vshrl.u32 %v1383, 7
        %v1385 = vsub.s32 4, %v1384
        %v1386 = vrot.slane %v373, %v1385
        %v1387 = vlaneseq
        %v1388 = vshrl.u32 %v1387, 7
        %v1389 = vsub.s32 5, %v1388
        %v1390 = vrot.slane %v373, %v1389
        %v1391 = vlaneseq
        %v1392 = vshrl.u32 %v1391, 7
        %v1393 = vsub.s32 6, %v1392
        %v1394 = vrot.slane %v373, %v1393
        %v1395 = vlaneseq
        %v1396 = vshrl.u32 %v1395, 7
        %v1397 = vsub.s32 7, %v1396
        %v1398 = vrot.slane %v373, %v1397
        %v1399 = vlaneseq
        %v1400 = vshrl.u32 %v1399, 7
        %v1401 = vsub.s32 0, %v1400
        %v1402 = vrot.slane %v374, %v1401
        %v1403 = vlaneseq
        %v1404 = vshrl.u32 %v1403, 7
        %v1405 = vsub.s32 1, %v1404
        %v1406 = vrot.slane %v374, %v1405
        %v1407 = vlaneseq
        %v1408 = vshrl.u32 %v1407, 7
        %v1409 = vsub.s32 2, %v1408
        %v1410 = vrot.slane %v374, %v1409
        %v1411 = vlaneseq
        %v1412 = vshrl.u32 %v1411, 7
        %v1413 = vsub.s32 3, %v1412
        %v1414 = vrot.slane %v374, %v1413
        %v1415 = vlaneseq
        %v1416 = vshrl.u32 %v1415, 7
        %v1417 = vsub.s32 4, %v1416
        %v1418 = vrot.slane %v374, %v1417
        %v1419 = vlaneseq
        %v1420 = vshrl.u32 %v1419, 7
        %v1421 = vsub.s32 5, %v1420
        %v1422 = vrot.slane %v374, %v1421
        %v1423 = vlaneseq
        %v1424 = vshrl.u32 %v1423, 7
        %v1425 = vsub.s32 6, %v1424
        %v1426 = vrot.slane %v374, %v1425
        %v1427 = vlaneseq
        %v1428 = vshrl.u32 %v1427, 7
        %v1429 = vsub.s32 7, %v1428
        %v1430 = vrot.slane %v374, %v1429
        %v1431 = vcombine.low %v410, %v414
        %v1432 = vcombine.low %v418, %v422
        %v1433 = vcombine.low %v426, %v430
        %v1434 = vcombine.low %v434, %v438
        %v1436 = vunpack.c.l.s4 1966171168
        %v1437 = vunpack.c.0.s8 %v1436
        %v1438 = vlaneseq
        %v1439 = vshrl.u32 %v1438, 7
        %v1440 = vsub.s32 %v1437, %v1439
        %v1441 = vrot.slane %v1431, %v1440
        %v1443 = vunpack.c.l.s4 1966171168
        %v1444 = vunpack.c.0.s8 %v1443
        %v1445 = vlaneseq
        %v1446 = vshrl.u32 %v1445, 7
        %v1447 = vsub.s32 %v1444, %v1446
        %v1448 = vrot.slane %v1432, %v1447
        %v1450 = vunpack.c.l.s4 1966171168
        %v1451 = vunpack.c.0.s8 %v1450
        %v1452 = vlaneseq
        %v1453 = vshrl.u32 %v1452, 7
        %v1454 = vsub.s32 %v1451, %v1453
        %v1455 = vrot.slane %v1433, %v1454
        %v1457 = vunpack.c.l.s4 1966171168
        %v1458 = vunpack.c.0.s8 %v1457
        %v1459 = vlaneseq
        %v1460 = vshrl.u32 %v1459, 7
        %v1461 = vsub.s32 %v1458, %v1460
        %v1462 = vrot.slane %v1434, %v1461
        %v1463 = vcombine.low %v1441, %v1448
        %v1464 = vcombine.low %v1455, %v1462
        %v1466 = vunpack.c.l.s4 1966171168
        %v1467 = vunpack.c.0.s8 %v1466
        %v1468 = vlaneseq
        %v1469 = vshrl.u32 %v1468, 7
        %v1470 = vsub.s32 %v1467, %v1469
        %v1471 = vrot.slane %v1463, %v1470
        %v1473 = vunpack.c.l.s4 1966171168
        %v1474 = vunpack.c.0.s8 %v1473
        %v1475 = vlaneseq
        %v1476 = vshrl.u32 %v1475, 7
        %v1477 = vsub.s32 %v1474, %v1476
        %v1478 = vrot.slane %v1464, %v1477
        %v1479 = vcombine.low %v1471, %v1478
        %v1480 = vcombine.low %v442, %v446
        %v1481 = vcombine.low %v450, %v454
        %v1482 = vcombine.low %v458, %v462
        %v1483 = vcombine.low %v466, %v470
        %v1485 = vunpack.c.l.s4 1966171168
        %v1486 = vunpack.c.0.s8 %v1485
        %v1487 = vlaneseq
        %v1488 = vshrl.u32 %v1487, 7
        %v1489 = vsub.s32 %v1486, %v1488
        %v1490 = vrot.slane %v1480, %v1489
        %v1492 = vunpack.c.l.s4 1966171168
        %v1493 = vunpack.c.0.s8 %v1492
        %v1494 = vlaneseq
        %v1495 = vshrl.u32 %v1494, 7
        %v1496 = vsub.s32 %v1493, %v1495
        %v1497 = vrot.slane %v1481, %v1496
        %v1499 = vunpack.c.l.s4 1966171168
        %v1500 = vunpack.c.0.s8 %v1499
        %v1501 = vlaneseq
        %v1502 = vshrl.u32 %v1501, 7
        %v1503 = vsub.s32 %v1500, %v1502
        %v1504 = vrot.slane %v1482, %v1503
        %v1506 = vunpack.c.l.s4 1966171168
        %v1507 = vunpack.c.0.s8 %v1506
        %v1508 = vlaneseq
        %v1509 = vshrl.u32 %v1508, 7
        %v1510 = vsub.s32 %v1507, %v1509
        %v1511 = vrot.slane %v1483, %v1510
        %v1512 = vcombine.low %v1490, %v1497
        %v1513 = vcombine.low %v1504, %v1511
        %v1515 = vunpack.c.l.s4 1966171168
        %v1516 = vunpack.c.0.s8 %v1515
        %v1517 = vlaneseq
        %v1518 = vshrl.u32 %v1517, 7
        %v1519 = vsub.s32 %v1516, %v1518
        %v1520 = vrot.slane %v1512, %v1519
        %v1522 = vunpack.c.l.s4 1966171168
        %v1523 = vunpack.c.0.s8 %v1522
        %v1524 = vlaneseq
        %v1525 = vshrl.u32 %v1524, 7
        %v1526 = vsub.s32 %v1523, %v1525
        %v1527 = vrot.slane %v1513, %v1526
        %v1528 = vcombine.low %v1520, %v1527
        %v1529 = vcombine.low %v474, %v478
        %v1530 = vcombine.low %v482, %v486
        %v1531 = vcombine.low %v490, %v494
        %v1532 = vcombine.low %v498, %v502
        %v1534 = vunpack.c.l.s4 1966171168
        %v1535 = vunpack.c.0.s8 %v1534
        %v1536 = vlaneseq
        %v1537 = vshrl.u32 %v1536, 7
        %v1538 = vsub.s32 %v1535, %v1537
        %v1539 = vrot.slane %v1529, %v1538
        %v1541 = vunpack.c.l.s4 1966171168
        %v1542 = vunpack.c.0.s8 %v1541
        %v1543 = vlaneseq
        %v1544 = vshrl.u32 %v1543, 7
        %v1545 = vsub.s32 %v1542, %v1544
        %v1546 = vrot.slane %v1530, %v1545
        %v1548 = vunpack.c.l.s4 1966171168
        %v1549 = vunpack.c.0.s8 %v1548
        %v1550 = vlaneseq
        %v1551 = vshrl.u32 %v1550, 7
        %v1552 = vsub.s32 %v1549, %v1551
        %v1553 = vrot.slane %v1531, %v1552
        %v1555 = vunpack.c.l.s4 1966171168
        %v1556 = vunpack.c.0.s8 %v1555
        %v1557 = vlaneseq
        %v1558 = vshrl.u32 %v1557, 7
        %v1559 = vsub.s32 %v1556, %v1558
        %v1560 = vrot.slane %v1532, %v1559
        %v1561 = vcombine.low %v1539, %v1546
        %v1562 = vcombine.low %v1553, %v1560
        %v1564 = vunpack.c.l.s4 1966171168
        %v1565 = vunpack.c.0.s8 %v1564
        %v1566 = vlaneseq
        %v1567 = vshrl.u32 %v1566, 7
        %v1568 = vsub.s32 %v1565, %v1567
        %v1569 = vrot.slane %v1561, %v1568
        %v1571 = vunpack.c.l.s4 1966171168
        %v1572 = vunpack.c.0.s8 %v1571
        %v1573 = vlaneseq
        %v1574 = vshrl.u32 %v1573, 7
        %v1575 = vsub.s32 %v1572, %v1574
        %v1576 = vrot.slane %v1562, %v1575
        %v1577 = vcombine.low %v1569, %v1576
        %v1578 = vcombine.low %v506, %v510
        %v1579 = vcombine.low %v514, %v518
        %v1580 = vcombine.low %v522, %v526
        %v1581 = vcombine.low %v530, %v534
        %v1583 = vunpack.c.l.s4 1966171168
        %v1584 = vunpack.c.0.s8 %v1583
        %v1585 = vlaneseq
        %v1586 = vshrl.u32 %v1585, 7
        %v1587 = vsub.s32 %v1584, %v1586
        %v1588 = vrot.slane %v1578, %v1587
        %v1590 = vunpack.c.l.s4 1966171168
        %v1591 = vunpack.c.0.s8 %v1590
        %v1592 = vlaneseq
        %v1593 = vshrl.u32 %v1592, 7
        %v1594 = vsub.s32 %v1591, %v1593
        %v1595 = vrot.slane %v1579, %v1594
        %v1597 = vunpack.c.l.s4 1966171168
        %v1598 = vunpack.c.0.s8 %v1597
        %v1599 = vlaneseq
        %v1600 = vshrl.u32 %v1599, 7
        %v1601 = vsub.s32 %v1598, %v1600
        %v1602 = vrot.slane %v1580, %v1601
        %v1604 = vunpack.c.l.s4 1966171168
        %v1605 = vunpack.c.0.s8 %v1604
        %v1606 = vlaneseq
        %v1607 = vshrl.u32 %v1606, 7
        %v1608 = vsub.s32 %v1605, %v1607
        %v1609 = vrot.slane %v1581, %v1608
        %v1610 = vcombine.low %v1588, %v1595
        %v1611 = vcombine.low %v1602, %v1609
        %v1613 = vunpack.c.l.s4 1966171168
        %v1614 = vunpack.c.0.s8 %v1613
        %v1615 = vlaneseq
        %v1616 = vshrl.u32 %v1615, 7
        %v1617 = vsub.s32 %v1614, %v1616
        %v1618 = vrot.slane %v1610, %v1617
        %v1620 = vunpack.c.l.s4 1966171168
        %v1621 = vunpack.c.0.s8 %v1620
        %v1622 = vlaneseq
        %v1623 = vshrl.u32 %v1622, 7
        %v1624 = vsub.s32 %v1621, %v1623
        %v1625 = vrot.slane %v1611, %v1624
        %v1626 = vcombine.low %v1618, %v1625
        %v1627 = vcombine.low %v538, %v542
        %v1628 = vcombine.low %v546, %v550
        %v1629 = vcombine.low %v554, %v558
        %v1630 = vcombine.low %v562, %v566
        %v1632 = vunpack.c.l.s4 1966171168
        %v1633 = vunpack.c.0.s8 %v1632
        %v1634 = vlaneseq
        %v1635 = vshrl.u32 %v1634, 7
        %v1636 = vsub.s32 %v1633, %v1635
        %v1637 = vrot.slane %v1627, %v1636
        %v1639 = vunpack.c.l.s4 1966171168
        %v1640 = vunpack.c.0.s8 %v1639
        %v1641 = vlaneseq
        %v1642 = vshrl.u32 %v1641, 7
        %v1643 = vsub.s32 %v1640, %v1642
        %v1644 = vrot.slane %v1628, %v1643
        %v1646 = vunpack.c.l.s4 1966171168
        %v1647 = vunpack.c.0.s8 %v1646
        %v1648 = vlaneseq
        %v1649 = vshrl.u32 %v1648, 7
        %v1650 = vsub.s32 %v1647, %v1649
        %v1651 = vrot.slane %v1629, %v1650
        %v1653 = vunpack.c.l.s4 1966171168
        %v1654 = vunpack.c.0.s8 %v1653
        %v1655 = vlaneseq
        %v1656 = vshrl.u32 %v1655, 7
        %v1657 = vsub.s32 %v1654, %v1656
        %v1658 = vrot.slane %v1630, %v1657
        %v1659 = vcombine.low %v1637, %v1644
        %v1660 = vcombine.low %v1651, %v1658
        %v1662 = vunpack.c.l.s4 1966171168
        %v1663 = vunpack.c.0.s8 %v1662
        %v1664 = vlaneseq
        %v1665 = vshrl.u32 %v1664, 7
        %v1666 = vsub.s32 %v1663, %v1665
        %v1667 = vrot.slane %v1659, %v1666
        %v1669 = vunpack.c.l.s4 1966171168
        %v1670 = vunpack.c.0.s8 %v1669
        %v1671 = vlaneseq
        %v1672 = vshrl.u32 %v1671, 7
        %v1673 = vsub.s32 %v1670, %v1672
        %v1674 = vrot.slane %v1660, %v1673
        %v1675 = vcombine.low %v1667, %v1674
        %v1676 = vcombine.low %v570, %v574
        %v1677 = vcombine.low %v578, %v582
        %v1678 = vcombine.low %v586, %v590
        %v1679 = vcombine.low %v594, %v598
        %v1681 = vunpack.c.l.s4 1966171168
        %v1682 = vunpack.c.0.s8 %v1681
        %v1683 = vlaneseq
        %v1684 = vshrl.u32 %v1683, 7
        %v1685 = vsub.s32 %v1682, %v1684
        %v1686 = vrot.slane %v1676, %v1685
        %v1688 = vunpack.c.l.s4 1966171168
        %v1689 = vunpack.c.0.s8 %v1688
        %v1690 = vlaneseq
        %v1691 = vshrl.u32 %v1690, 7
        %v1692 = vsub.s32 %v1689, %v1691
        %v1693 = vrot.slane %v1677, %v1692
        %v1695 = vunpack.c.l.s4 1966171168
        %v1696 = vunpack.c.0.s8 %v1695
        %v1697 = vlaneseq
        %v1698 = vshrl.u32 %v1697, 7
        %v1699 = vsub.s32 %v1696, %v1698
        %v1700 = vrot.slane %v1678, %v1699
        %v1702 = vunpack.c.l.s4 1966171168
        %v1703 = vunpack.c.0.s8 %v1702
        %v1704 = vlaneseq
        %v1705 = vshrl.u32 %v1704, 7
        %v1706 = vsub.s32 %v1703, %v1705
        %v1707 = vrot.slane %v1679, %v1706
        %v1708 = vcombine.low %v1686, %v1693
        %v1709 = vcombine.low %v1700, %v1707
        %v1711 = vunpack.c.l.s4 1966171168
        %v1712 = vunpack.c.0.s8 %v1711
        %v1713 = vlaneseq
        %v1714 = vshrl.u32 %v1713, 7
        %v1715 = vsub.s32 %v1712, %v1714
        %v1716 = vrot.slane %v1708, %v1715
        %v1718 = vunpack.c.l.s4 1966171168
        %v1719 = vunpack.c.0.s8 %v1718
        %v1720 = vlaneseq
        %v1721 = vshrl.u32 %v1720, 7
        %v1722 = vsub.s32 %v1719, %v1721
        %v1723 = vrot.slane %v1709, %v1722
        %v1724 = vcombine.low %v1716, %v1723
        %v1725 = vcombine.low %v602, %v606
        %v1726 = vcombine.low %v610, %v614
        %v1727 = vcombine.low %v618, %v622
        %v1728 = vcombine.low %v626, %v630
        %v1730 = vunpack.c.l.s4 1966171168
        %v1731 = vunpack.c.0.s8 %v1730
        %v1732 = vlaneseq
        %v1733 = vshrl.u32 %v1732, 7
        %v1734 = vsub.s32 %v1731, %v1733
        %v1735 = vrot.slane %v1725, %v1734
        %v1737 = vunpack.c.l.s4 1966171168
        %v1738 = vunpack.c.0.s8 %v1737
        %v1739 = vlaneseq
        %v1740 = vshrl.u32 %v1739, 7
        %v1741 = vsub.s32 %v1738, %v1740
        %v1742 = vrot.slane %v1726, %v1741
        %v1744 = vunpack.c.l.s4 1966171168
        %v1745 = vunpack.c.0.s8 %v1744
        %v1746 = vlaneseq
        %v1747 = vshrl.u32 %v1746, 7
        %v1748 = vsub.s32 %v1745, %v1747
        %v1749 = vrot.slane %v1727, %v1748
        %v1751 = vunpack.c.l.s4 1966171168
        %v1752 = vunpack.c.0.s8 %v1751
        %v1753 = vlaneseq
        %v1754 = vshrl.u32 %v1753, 7
        %v1755 = vsub.s32 %v1752, %v1754
        %v1756 = vrot.slane %v1728, %v1755
        %v1757 = vcombine.low %v1735, %v1742
        %v1758 = vcombine.low %v1749, %v1756
        %v1760 = vunpack.c.l.s4 1966171168
        %v1761 = vunpack.c.0.s8 %v1760
        %v1762 = vlaneseq
        %v1763 = vshrl.u32 %v1762, 7
        %v1764 = vsub.s32 %v1761, %v1763
        %v1765 = vrot.slane %v1757, %v1764
        %v1767 = vunpack.c.l.s4 1966171168
        %v1768 = vunpack.c.0.s8 %v1767
        %v1769 = vlaneseq
        %v1770 = vshrl.u32 %v1769, 7
        %v1771 = vsub.s32 %v1768, %v1770
        %v1772 = vrot.slane %v1758, %v1771
        %v1773 = vcombine.low %v1765, %v1772
        %v1774 = vcombine.low %v634, %v638
        %v1775 = vcombine.low %v642, %v646
        %v1776 = vcombine.low %v650, %v654
        %v1777 = vcombine.low %v658, %v662
        %v1779 = vunpack.c.l.s4 1966171168
        %v1780 = vunpack.c.0.s8 %v1779
        %v1781 = vlaneseq
        %v1782 = vshrl.u32 %v1781, 7
        %v1783 = vsub.s32 %v1780, %v1782
        %v1784 = vrot.slane %v1774, %v1783
        %v1786 = vunpack.c.l.s4 1966171168
        %v1787 = vunpack.c.0.s8 %v1786
        %v1788 = vlaneseq
        %v1789 = vshrl.u32 %v1788, 7
        %v1790 = vsub.s32 %v1787, %v1789
        %v1791 = vrot.slane %v1775, %v1790
        %v1793 = vunpack.c.l.s4 1966171168
        %v1794 = vunpack.c.0.s8 %v1793
        %v1795 = vlaneseq
        %v1796 = vshrl.u32 %v1795, 7
        %v1797 = vsub.s32 %v1794, %v1796
        %v1798 = vrot.slane %v1776, %v1797
        %v1800 = vunpack.c.l.s4 1966171168
        %v1801 = vunpack.c.0.s8 %v1800
        %v1802 = vlaneseq
        %v1803 = vshrl.u32 %v1802, 7
        %v1804 = vsub.s32 %v1801, %v1803
        %v1805 = vrot.slane %v1777, %v1804
        %v1806 = vcombine.low %v1784, %v1791
        %v1807 = vcombine.low %v1798, %v1805
        %v1809 = vunpack.c.l.s4 1966171168
        %v1810 = vunpack.c.0.s8 %v1809
        %v1811 = vlaneseq
        %v1812 = vshrl.u32 %v1811, 7
        %v1813 = vsub.s32 %v1810, %v1812
        %v1814 = vrot.slane %v1806, %v1813
        %v1816 = vunpack.c.l.s4 1966171168
        %v1817 = vunpack.c.0.s8 %v1816
        %v1818 = vlaneseq
        %v1819 = vshrl.u32 %v1818, 7
        %v1820 = vsub.s32 %v1817, %v1819
        %v1821 = vrot.slane %v1807, %v1820
        %v1822 = vcombine.low %v1814, %v1821
        %v1823 = vcombine.low %v666, %v670
        %v1824 = vcombine.low %v674, %v678
        %v1825 = vcombine.low %v682, %v686
        %v1826 = vcombine.low %v690, %v694
        %v1828 = vunpack.c.l.s4 1966171168
        %v1829 = vunpack.c.0.s8 %v1828
        %v1830 = vlaneseq
        %v1831 = vshrl.u32 %v1830, 7
        %v1832 = vsub.s32 %v1829, %v1831
        %v1833 = vrot.slane %v1823, %v1832
        %v1835 = vunpack.c.l.s4 1966171168
        %v1836 = vunpack.c.0.s8 %v1835
        %v1837 = vlaneseq
        %v1838 = vshrl.u32 %v1837, 7
        %v1839 = vsub.s32 %v1836, %v1838
        %v1840 = vrot.slane %v1824, %v1839
        %v1842 = vunpack.c.l.s4 1966171168
        %v1843 = vunpack.c.0.s8 %v1842
        %v1844 = vlaneseq
        %v1845 = vshrl.u32 %v1844, 7
        %v1846 = vsub.s32 %v1843, %v1845
        %v1847 = vrot.slane %v1825, %v1846
        %v1849 = vunpack.c.l.s4 1966171168
        %v1850 = vunpack.c.0.s8 %v1849
        %v1851 = vlaneseq
        %v1852 = vshrl.u32 %v1851, 7
        %v1853 = vsub.s32 %v1850, %v1852
        %v1854 = vrot.slane %v1826, %v1853
        %v1855 = vcombine.low %v1833, %v1840
        %v1856 = vcombine.low %v1847, %v1854
        %v1858 = vunpack.c.l.s4 1966171168
        %v1859 = vunpack.c.0.s8 %v1858
        %v1860 = vlaneseq
        %v1861 = vshrl.u32 %v1860, 7
        %v1862 = vsub.s32 %v1859, %v1861
        %v1863 = vrot.slane %v1855, %v1862
        %v1865 = vunpack.c.l.s4 1966171168
        %v1866 = vunpack.c.0.s8 %v1865
        %v1867 = vlaneseq
        %v1868 = vshrl.u32 %v1867, 7
        %v1869 = vsub.s32 %v1866, %v1868
        %v1870 = vrot.slane %v1856, %v1869
        %v1871 = vcombine.low %v1863, %v1870
        %v1872 = vcombine.low %v698, %v702
        %v1873 = vcombine.low %v706, %v710
        %v1874 = vcombine.low %v714, %v718
        %v1875 = vcombine.low %v722, %v726
        %v1877 = vunpack.c.l.s4 1966171168
        %v1878 = vunpack.c.0.s8 %v1877
        %v1879 = vlaneseq
        %v1880 = vshrl.u32 %v1879, 7
        %v1881 = vsub.s32 %v1878, %v1880
        %v1882 = vrot.slane %v1872, %v1881
        %v1884 = vunpack.c.l.s4 1966171168
        %v1885 = vunpack.c.0.s8 %v1884
        %v1886 = vlaneseq
        %v1887 = vshrl.u32 %v1886, 7
        %v1888 = vsub.s32 %v1885, %v1887
        %v1889 = vrot.slane %v1873, %v1888
        %v1891 = vunpack.c.l.s4 1966171168
        %v1892 = vunpack.c.0.s8 %v1891
        %v1893 = vlaneseq
        %v1894 = vshrl.u32 %v1893, 7
        %v1895 = vsub.s32 %v1892, %v1894
        %v1896 = vrot.slane %v1874, %v1895
        %v1898 = vunpack.c.l.s4 1966171168
        %v1899 = vunpack.c.0.s8 %v1898
        %v1900 = vlaneseq
        %v1901 = vshrl.u32 %v1900, 7
        %v1902 = vsub.s32 %v1899, %v1901
        %v1903 = vrot.slane %v1875, %v1902
        %v1904 = vcombine.low %v1882, %v1889
        %v1905 = vcombine.low %v1896, %v1903
        %v1907 = vunpack.c.l.s4 1966171168
        %v1908 = vunpack.c.0.s8 %v1907
        %v1909 = vlaneseq
        %v1910 = vshrl.u32 %v1909, 7
        %v1911 = vsub.s32 %v1908, %v1910
        %v1912 = vrot.slane %v1904, %v1911
        %v1914 = vunpack.c.l.s4 1966171168
        %v1915 = vunpack.c.0.s8 %v1914
        %v1916 = vlaneseq
        %v1917 = vshrl.u32 %v1916, 7
        %v1918 = vsub.s32 %v1915, %v1917
        %v1919 = vrot.slane %v1905, %v1918
        %v1920 = vcombine.low %v1912, %v1919
        %v1921 = vcombine.low %v730, %v734
        %v1922 = vcombine.low %v738, %v742
        %v1923 = vcombine.low %v746, %v750
        %v1924 = vcombine.low %v754, %v758
        %v1926 = vunpack.c.l.s4 1966171168
        %v1927 = vunpack.c.0.s8 %v1926
        %v1928 = vlaneseq
        %v1929 = vshrl.u32 %v1928, 7
        %v1930 = vsub.s32 %v1927, %v1929
        %v1931 = vrot.slane %v1921, %v1930
        %v1933 = vunpack.c.l.s4 1966171168
        %v1934 = vunpack.c.0.s8 %v1933
        %v1935 = vlaneseq
        %v1936 = vshrl.u32 %v1935, 7
        %v1937 = vsub.s32 %v1934, %v1936
        %v1938 = vrot.slane %v1922, %v1937
        %v1940 = vunpack.c.l.s4 1966171168
        %v1941 = vunpack.c.0.s8 %v1940
        %v1942 = vlaneseq
        %v1943 = vshrl.u32 %v1942, 7
        %v1944 = vsub.s32 %v1941, %v1943
        %v1945 = vrot.slane %v1923, %v1944
        %v1947 = vunpack.c.l.s4 1966171168
        %v1948 = vunpack.c.0.s8 %v1947
        %v1949 = vlaneseq
        %v1950 = vshrl.u32 %v1949, 7
        %v1951 = vsub.s32 %v1948, %v1950
        %v1952 = vrot.slane %v1924, %v1951
        %v1953 = vcombine.low %v1931, %v1938
        %v1954 = vcombine.low %v1945, %v1952
        %v1956 = vunpack.c.l.s4 1966171168
        %v1957 = vunpack.c.0.s8 %v1956
        %v1958 = vlaneseq
        %v1959 = vshrl.u32 %v1958, 7
        %v1960 = vsub.s32 %v1957, %v1959
        %v1961 = vrot.slane %v1953, %v1960
        %v1963 = vunpack.c.l.s4 1966171168
        %v1964 = vunpack.c.0.s8 %v1963
        %v1965 = vlaneseq
        %v1966 = vshrl.u32 %v1965, 7
        %v1967 = vsub.s32 %v1964, %v1966
        %v1968 = vrot.slane %v1954, %v1967
        %v1969 = vcombine.low %v1961, %v1968
        %v1970 = vcombine.low %v762, %v766
        %v1971 = vcombine.low %v770, %v774
        %v1972 = vcombine.low %v778, %v782
        %v1973 = vcombine.low %v786, %v790
        %v1975 = vunpack.c.l.s4 1966171168
        %v1976 = vunpack.c.0.s8 %v1975
        %v1977 = vlaneseq
        %v1978 = vshrl.u32 %v1977, 7
        %v1979 = vsub.s32 %v1976, %v1978
        %v1980 = vrot.slane %v1970, %v1979
        %v1982 = vunpack.c.l.s4 1966171168
        %v1983 = vunpack.c.0.s8 %v1982
        %v1984 = vlaneseq
        %v1985 = vshrl.u32 %v1984, 7
        %v1986 = vsub.s32 %v1983, %v1985
        %v1987 = vrot.slane %v1971, %v1986
        %v1989 = vunpack.c.l.s4 1966171168
        %v1990 = vunpack.c.0.s8 %v1989
        %v1991 = vlaneseq
        %v1992 = vshrl.u32 %v1991, 7
        %v1993 = vsub.s32 %v1990, %v1992
        %v1994 = vrot.slane %v1972, %v1993
        %v1996 = vunpack.c.l.s4 1966171168
        %v1997 = vunpack.c.0.s8 %v1996
        %v1998 = vlaneseq
        %v1999 = vshrl.u32 %v1998, 7
        %v2000 = vsub.s32 %v1997, %v1999
        %v2001 = vrot.slane %v1973, %v2000
        %v2002 = vcombine.low %v1980, %v1987
        %v2003 = vcombine.low %v1994, %v2001
        %v2005 = vunpack.c.l.s4 1966171168
        %v2006 = vunpack.c.0.s8 %v2005
        %v2007 = vlaneseq
        %v2008 = vshrl.u32 %v2007, 7
        %v2009 = vsub.s32 %v2006, %v2008
        %v2010 = vrot.slane %v2002, %v2009
        %v2012 = vunpack.c.l.s4 1966171168
        %v2013 = vunpack.c.0.s8 %v2012
        %v2014 = vlaneseq
        %v2015 = vshrl.u32 %v2014, 7
        %v2016 = vsub.s32 %v2013, %v2015
        %v2017 = vrot.slane %v2003, %v2016
        %v2018 = vcombine.low %v2010, %v2017
        %v2019 = vcombine.low %v794, %v798
        %v2020 = vcombine.low %v802, %v806
        %v2021 = vcombine.low %v810, %v814
        %v2022 = vcombine.low %v818, %v822
        %v2024 = vunpack.c.l.s4 1966171168
        %v2025 = vunpack.c.0.s8 %v2024
        %v2026 = vlaneseq
        %v2027 = vshrl.u32 %v2026, 7
        %v2028 = vsub.s32 %v2025, %v2027
        %v2029 = vrot.slane %v2019, %v2028
        %v2031 = vunpack.c.l.s4 1966171168
        %v2032 = vunpack.c.0.s8 %v2031
        %v2033 = vlaneseq
        %v2034 = vshrl.u32 %v2033, 7
        %v2035 = vsub.s32 %v2032, %v2034
        %v2036 = vrot.slane %v2020, %v2035
        %v2038 = vunpack.c.l.s4 1966171168
        %v2039 = vunpack.c.0.s8 %v2038
        %v2040 = vlaneseq
        %v2041 = vshrl.u32 %v2040, 7
        %v2042 = vsub.s32 %v2039, %v2041
        %v2043 = vrot.slane %v2021, %v2042
        %v2045 = vunpack.c.l.s4 1966171168
        %v2046 = vunpack.c.0.s8 %v2045
        %v2047 = vlaneseq
        %v2048 = vshrl.u32 %v2047, 7
        %v2049 = vsub.s32 %v2046, %v2048
        %v2050 = vrot.slane %v2022, %v2049
        %v2051 = vcombine.low %v2029, %v2036
        %v2052 = vcombine.low %v2043, %v2050
        %v2054 = vunpack.c.l.s4 1966171168
        %v2055 = vunpack.c.0.s8 %v2054
        %v2056 = vlaneseq
        %v2057 = vshrl.u32 %v2056, 7
        %v2058 = vsub.s32 %v2055, %v2057
        %v2059 = vrot.slane %v2051, %v2058
        %v2061 = vunpack.c.l.s4 1966171168
        %v2062 = vunpack.c.0.s8 %v2061
        %v2063 = vlaneseq
        %v2064 = vshrl.u32 %v2063, 7
        %v2065 = vsub.s32 %v2062, %v2064
        %v2066 = vrot.slane %v2052, %v2065
        %v2067 = vcombine.low %v2059, %v2066
        %v2068 = vcombine.low %v826, %v830
        %v2069 = vcombine.low %v834, %v838
        %v2070 = vcombine.low %v842, %v846
        %v2071 = vcombine.low %v850, %v854
        %v2073 = vunpack.c.l.s4 1966171168
        %v2074 = vunpack.c.0.s8 %v2073
        %v2075 = vlaneseq
        %v2076 = vshrl.u32 %v2075, 7
        %v2077 = vsub.s32 %v2074, %v2076
        %v2078 = vrot.slane %v2068, %v2077
        %v2080 = vunpack.c.l.s4 1966171168
        %v2081 = vunpack.c.0.s8 %v2080
        %v2082 = vlaneseq
        %v2083 = vshrl.u32 %v2082, 7
        %v2084 = vsub.s32 %v2081, %v2083
        %v2085 = vrot.slane %v2069, %v2084
        %v2087 = vunpack.c.l.s4 1966171168
        %v2088 = vunpack.c.0.s8 %v2087
        %v2089 = vlaneseq
        %v2090 = vshrl.u32 %v2089, 7
        %v2091 = vsub.s32 %v2088, %v2090
        %v2092 = vrot.slane %v2070, %v2091
        %v2094 = vunpack.c.l.s4 1966171168
        %v2095 = vunpack.c.0.s8 %v2094
        %v2096 = vlaneseq
        %v2097 = vshrl.u32 %v2096, 7
        %v2098 = vsub.s32 %v2095, %v2097
        %v2099 = vrot.slane %v2071, %v2098
        %v2100 = vcombine.low %v2078, %v2085
        %v2101 = vcombine.low %v2092, %v2099
        %v2103 = vunpack.c.l.s4 1966171168
        %v2104 = vunpack.c.0.s8 %v2103
        %v2105 = vlaneseq
        %v2106 = vshrl.u32 %v2105, 7
        %v2107 = vsub.s32 %v2104, %v2106
        %v2108 = vrot.slane %v2100, %v2107
        %v2110 = vunpack.c.l.s4 1966171168
        %v2111 = vunpack.c.0.s8 %v2110
        %v2112 = vlaneseq
        %v2113 = vshrl.u32 %v2112, 7
        %v2114 = vsub.s32 %v2111, %v2113
        %v2115 = vrot.slane %v2101, %v2114
        %v2116 = vcombine.low %v2108, %v2115
        %v2117 = vcombine.low %v858, %v862
        %v2118 = vcombine.low %v866, %v870
        %v2119 = vcombine.low %v874, %v878
        %v2120 = vcombine.low %v882, %v886
        %v2122 = vunpack.c.l.s4 1966171168
        %v2123 = vunpack.c.0.s8 %v2122
        %v2124 = vlaneseq
        %v2125 = vshrl.u32 %v2124, 7
        %v2126 = vsub.s32 %v2123, %v2125
        %v2127 = vrot.slane %v2117, %v2126
        %v2129 = vunpack.c.l.s4 1966171168
        %v2130 = vunpack.c.0.s8 %v2129
        %v2131 = vlaneseq
        %v2132 = vshrl.u32 %v2131, 7
        %v2133 = vsub.s32 %v2130, %v2132
        %v2134 = vrot.slane %v2118, %v2133
        %v2136 = vunpack.c.l.s4 1966171168
        %v2137 = vunpack.c.0.s8 %v2136
        %v2138 = vlaneseq
        %v2139 = vshrl.u32 %v2138, 7
        %v2140 = vsub.s32 %v2137, %v2139
        %v2141 = vrot.slane %v2119, %v2140
        %v2143 = vunpack.c.l.s4 1966171168
        %v2144 = vunpack.c.0.s8 %v2143
        %v2145 = vlaneseq
        %v2146 = vshrl.u32 %v2145, 7
        %v2147 = vsub.s32 %v2144, %v2146
        %v2148 = vrot.slane %v2120, %v2147
        %v2149 = vcombine.low %v2127, %v2134
        %v2150 = vcombine.low %v2141, %v2148
        %v2152 = vunpack.c.l.s4 1966171168
        %v2153 = vunpack.c.0.s8 %v2152
        %v2154 = vlaneseq
        %v2155 = vshrl.u32 %v2154, 7
        %v2156 = vsub.s32 %v2153, %v2155
        %v2157 = vrot.slane %v2149, %v2156
        %v2159 = vunpack.c.l.s4 1966171168
        %v2160 = vunpack.c.0.s8 %v2159
        %v2161 = vlaneseq
        %v2162 = vshrl.u32 %v2161, 7
        %v2163 = vsub.s32 %v2160, %v2162
        %v2164 = vrot.slane %v2150, %v2163
        %v2165 = vcombine.low %v2157, %v2164
        %v2166 = vcombine.low %v890, %v894
        %v2167 = vcombine.low %v898, %v902
        %v2168 = vcombine.low %v906, %v910
        %v2169 = vcombine.low %v914, %v918
        %v2171 = vunpack.c.l.s4 1966171168
        %v2172 = vunpack.c.0.s8 %v2171
        %v2173 = vlaneseq
        %v2174 = vshrl.u32 %v2173, 7
        %v2175 = vsub.s32 %v2172, %v2174
        %v2176 = vrot.slane %v2166, %v2175
        %v2178 = vunpack.c.l.s4 1966171168
        %v2179 = vunpack.c.0.s8 %v2178
        %v2180 = vlaneseq
        %v2181 = vshrl.u32 %v2180, 7
        %v2182 = vsub.s32 %v2179, %v2181
        %v2183 = vrot.slane %v2167, %v2182
        %v2185 = vunpack.c.l.s4 1966171168
        %v2186 = vunpack.c.0.s8 %v2185
        %v2187 = vlaneseq
        %v2188 = vshrl.u32 %v2187, 7
        %v2189 = vsub.s32 %v2186, %v2188
        %v2190 = vrot.slane %v2168, %v2189
        %v2192 = vunpack.c.l.s4 1966171168
        %v2193 = vunpack.c.0.s8 %v2192
        %v2194 = vlaneseq
        %v2195 = vshrl.u32 %v2194, 7
        %v2196 = vsub.s32 %v2193, %v2195
        %v2197 = vrot.slane %v2169, %v2196
        %v2198 = vcombine.low %v2176, %v2183
        %v2199 = vcombine.low %v2190, %v2197
        %v2201 = vunpack.c.l.s4 1966171168
        %v2202 = vunpack.c.0.s8 %v2201
        %v2203 = vlaneseq
        %v2204 = vshrl.u32 %v2203, 7
        %v2205 = vsub.s32 %v2202, %v2204
        %v2206 = vrot.slane %v2198, %v2205
        %v2208 = vunpack.c.l.s4 1966171168
        %v2209 = vunpack.c.0.s8 %v2208
        %v2210 = vlaneseq
        %v2211 = vshrl.u32 %v2210, 7
        %v2212 = vsub.s32 %v2209, %v2211
        %v2213 = vrot.slane %v2199, %v2212
        %v2214 = vcombine.low %v2206, %v2213
        %v2215 = vcombine.low %v922, %v926
        %v2216 = vcombine.low %v930, %v934
        %v2217 = vcombine.low %v938, %v942
        %v2218 = vcombine.low %v946, %v950
        %v2220 = vunpack.c.l.s4 1966171168
        %v2221 = vunpack.c.0.s8 %v2220
        %v2222 = vlaneseq
        %v2223 = vshrl.u32 %v2222, 7
        %v2224 = vsub.s32 %v2221, %v2223
        %v2225 = vrot.slane %v2215, %v2224
        %v2227 = vunpack.c.l.s4 1966171168
        %v2228 = vunpack.c.0.s8 %v2227
        %v2229 = vlaneseq
        %v2230 = vshrl.u32 %v2229, 7
        %v2231 = vsub.s32 %v2228, %v2230
        %v2232 = vrot.slane %v2216, %v2231
        %v2234 = vunpack.c.l.s4 1966171168
        %v2235 = vunpack.c.0.s8 %v2234
        %v2236 = vlaneseq
        %v2237 = vshrl.u32 %v2236, 7
        %v2238 = vsub.s32 %v2235, %v2237
        %v2239 = vrot.slane %v2217, %v2238
        %v2241 = vunpack.c.l.s4 1966171168
        %v2242 = vunpack.c.0.s8 %v2241
        %v2243 = vlaneseq
        %v2244 = vshrl.u32 %v2243, 7
        %v2245 = vsub.s32 %v2242, %v2244
        %v2246 = vrot.slane %v2218, %v2245
        %v2247 = vcombine.low %v2225, %v2232
        %v2248 = vcombine.low %v2239, %v2246
        %v2250 = vunpack.c.l.s4 1966171168
        %v2251 = vunpack.c.0.s8 %v2250
        %v2252 = vlaneseq
        %v2253 = vshrl.u32 %v2252, 7
        %v2254 = vsub.s32 %v2251, %v2253
        %v2255 = vrot.slane %v2247, %v2254
        %v2257 = vunpack.c.l.s4 1966171168
        %v2258 = vunpack.c.0.s8 %v2257
        %v2259 = vlaneseq
        %v2260 = vshrl.u32 %v2259, 7
        %v2261 = vsub.s32 %v2258, %v2260
        %v2262 = vrot.slane %v2248, %v2261
        %v2263 = vcombine.low %v2255, %v2262
        %v2264 = vcombine.low %v954, %v958
        %v2265 = vcombine.low %v962, %v966
        %v2266 = vcombine.low %v970, %v974
        %v2267 = vcombine.low %v978, %v982
        %v2269 = vunpack.c.l.s4 1966171168
        %v2270 = vunpack.c.0.s8 %v2269
        %v2271 = vlaneseq
        %v2272 = vshrl.u32 %v2271, 7
        %v2273 = vsub.s32 %v2270, %v2272
        %v2274 = vrot.slane %v2264, %v2273
        %v2276 = vunpack.c.l.s4 1966171168
        %v2277 = vunpack.c.0.s8 %v2276
        %v2278 = vlaneseq
        %v2279 = vshrl.u32 %v2278, 7
        %v2280 = vsub.s32 %v2277, %v2279
        %v2281 = vrot.slane %v2265, %v2280
        %v2283 = vunpack.c.l.s4 1966171168
        %v2284 = vunpack.c.0.s8 %v2283
        %v2285 = vlaneseq
        %v2286 = vshrl.u32 %v2285, 7
        %v2287 = vsub.s32 %v2284, %v2286
        %v2288 = vrot.slane %v2266, %v2287
        %v2290 = vunpack.c.l.s4 1966171168
        %v2291 = vunpack.c.0.s8 %v2290
        %v2292 = vlaneseq
        %v2293 = vshrl.u32 %v2292, 7
        %v2294 = vsub.s32 %v2291, %v2293
        %v2295 = vrot.slane %v2267, %v2294
        %v2296 = vcombine.low %v2274, %v2281
        %v2297 = vcombine.low %v2288, %v2295
        %v2299 = vunpack.c.l.s4 1966171168
        %v2300 = vunpack.c.0.s8 %v2299
        %v2301 = vlaneseq
        %v2302 = vshrl.u32 %v2301, 7
        %v2303 = vsub.s32 %v2300, %v2302
        %v2304 = vrot.slane %v2296, %v2303
        %v2306 = vunpack.c.l.s4 1966171168
        %v2307 = vunpack.c.0.s8 %v2306
        %v2308 = vlaneseq
        %v2309 = vshrl.u32 %v2308, 7
        %v2310 = vsub.s32 %v2307, %v2309
        %v2311 = vrot.slane %v2297, %v2310
        %v2312 = vcombine.low %v2304, %v2311
        %v2313 = vcombine.low %v986, %v990
        %v2314 = vcombine.low %v994, %v998
        %v2315 = vcombine.low %v1002, %v1006
        %v2316 = vcombine.low %v1010, %v1014
        %v2318 = vunpack.c.l.s4 1966171168
        %v2319 = vunpack.c.0.s8 %v2318
        %v2320 = vlaneseq
        %v2321 = vshrl.u32 %v2320, 7
        %v2322 = vsub.s32 %v2319, %v2321
        %v2323 = vrot.slane %v2313, %v2322
        %v2325 = vunpack.c.l.s4 1966171168
        %v2326 = vunpack.c.0.s8 %v2325
        %v2327 = vlaneseq
        %v2328 = vshrl.u32 %v2327, 7
        %v2329 = vsub.s32 %v2326, %v2328
        %v2330 = vrot.slane %v2314, %v2329
        %v2332 = vunpack.c.l.s4 1966171168
        %v2333 = vunpack.c.0.s8 %v2332
        %v2334 = vlaneseq
        %v2335 = vshrl.u32 %v2334, 7
        %v2336 = vsub.s32 %v2333, %v2335
        %v2337 = vrot.slane %v2315, %v2336
        %v2339 = vunpack.c.l.s4 1966171168
        %v2340 = vunpack.c.0.s8 %v2339
        %v2341 = vlaneseq
        %v2342 = vshrl.u32 %v2341, 7
        %v2343 = vsub.s32 %v2340, %v2342
        %v2344 = vrot.slane %v2316, %v2343
        %v2345 = vcombine.low %v2323, %v2330
        %v2346 = vcombine.low %v2337, %v2344
        %v2348 = vunpack.c.l.s4 1966171168
        %v2349 = vunpack.c.0.s8 %v2348
        %v2350 = vlaneseq
        %v2351 = vshrl.u32 %v2350, 7
        %v2352 = vsub.s32 %v2349, %v2351
        %v2353 = vrot.slane %v2345, %v2352
        %v2355 = vunpack.c.l.s4 1966171168
        %v2356 = vunpack.c.0.s8 %v2355
        %v2357 = vlaneseq
        %v2358 = vshrl.u32 %v2357, 7
        %v2359 = vsub.s32 %v2356, %v2358
        %v2360 = vrot.slane %v2346, %v2359
        %v2361 = vcombine.low %v2353, %v2360
        %v2362 = vcombine.low %v1018, %v1022
        %v2363 = vcombine.low %v1026, %v1030
        %v2364 = vcombine.low %v1034, %v1038
        %v2365 = vcombine.low %v1042, %v1046
        %v2367 = vunpack.c.l.s4 1966171168
        %v2368 = vunpack.c.0.s8 %v2367
        %v2369 = vlaneseq
        %v2370 = vshrl.u32 %v2369, 7
        %v2371 = vsub.s32 %v2368, %v2370
        %v2372 = vrot.slane %v2362, %v2371
        %v2374 = vunpack.c.l.s4 1966171168
        %v2375 = vunpack.c.0.s8 %v2374
        %v2376 = vlaneseq
        %v2377 = vshrl.u32 %v2376, 7
        %v2378 = vsub.s32 %v2375, %v2377
        %v2379 = vrot.slane %v2363, %v2378
        %v2381 = vunpack.c.l.s4 1966171168
        %v2382 = vunpack.c.0.s8 %v2381
        %v2383 = vlaneseq
        %v2384 = vshrl.u32 %v2383, 7
        %v2385 = vsub.s32 %v2382, %v2384
        %v2386 = vrot.slane %v2364, %v2385
        %v2388 = vunpack.c.l.s4 1966171168
        %v2389 = vunpack.c.0.s8 %v2388
        %v2390 = vlaneseq
        %v2391 = vshrl.u32 %v2390, 7
        %v2392 = vsub.s32 %v2389, %v2391
        %v2393 = vrot.slane %v2365, %v2392
        %v2394 = vcombine.low %v2372, %v2379
        %v2395 = vcombine.low %v2386, %v2393
        %v2397 = vunpack.c.l.s4 1966171168
        %v2398 = vunpack.c.0.s8 %v2397
        %v2399 = vlaneseq
        %v2400 = vshrl.u32 %v2399, 7
        %v2401 = vsub.s32 %v2398, %v2400
        %v2402 = vrot.slane %v2394, %v2401
        %v2404 = vunpack.c.l.s4 1966171168
        %v2405 = vunpack.c.0.s8 %v2404
        %v2406 = vlaneseq
        %v2407 = vshrl.u32 %v2406, 7
        %v2408 = vsub.s32 %v2405, %v2407
        %v2409 = vrot.slane %v2395, %v2408
        %v2410 = vcombine.low %v2402, %v2409
        %v2411 = vcombine.low %v1050, %v1054
        %v2412 = vcombine.low %v1058, %v1062
        %v2413 = vcombine.low %v1066, %v1070
        %v2414 = vcombine.low %v1074, %v1078
        %v2416 = vunpack.c.l.s4 1966171168
        %v2417 = vunpack.c.0.s8 %v2416
        %v2418 = vlaneseq
        %v2419 = vshrl.u32 %v2418, 7
        %v2420 = vsub.s32 %v2417, %v2419
        %v2421 = vrot.slane %v2411, %v2420
        %v2423 = vunpack.c.l.s4 1966171168
        %v2424 = vunpack.c.0.s8 %v2423
        %v2425 = vlaneseq
        %v2426 = vshrl.u32 %v2425, 7
        %v2427 = vsub.s32 %v2424, %v2426
        %v2428 = vrot.slane %v2412, %v2427
        %v2430 = vunpack.c.l.s4 1966171168
        %v2431 = vunpack.c.0.s8 %v2430
        %v2432 = vlaneseq
        %v2433 = vshrl.u32 %v2432, 7
        %v2434 = vsub.s32 %v2431, %v2433
        %v2435 = vrot.slane %v2413, %v2434
        %v2437 = vunpack.c.l.s4 1966171168
        %v2438 = vunpack.c.0.s8 %v2437
        %v2439 = vlaneseq
        %v2440 = vshrl.u32 %v2439, 7
        %v2441 = vsub.s32 %v2438, %v2440
        %v2442 = vrot.slane %v2414, %v2441
        %v2443 = vcombine.low %v2421, %v2428
        %v2444 = vcombine.low %v2435, %v2442
        %v2446 = vunpack.c.l.s4 1966171168
        %v2447 = vunpack.c.0.s8 %v2446
        %v2448 = vlaneseq
        %v2449 = vshrl.u32 %v2448, 7
        %v2450 = vsub.s32 %v2447, %v2449
        %v2451 = vrot.slane %v2443, %v2450
        %v2453 = vunpack.c.l.s4 1966171168
        %v2454 = vunpack.c.0.s8 %v2453
        %v2455 = vlaneseq
        %v2456 = vshrl.u32 %v2455, 7
        %v2457 = vsub.s32 %v2454, %v2456
        %v2458 = vrot.slane %v2444, %v2457
        %v2459 = vcombine.low %v2451, %v2458
        %v2460 = vcombine.low %v1082, %v1086
        %v2461 = vcombine.low %v1090, %v1094
        %v2462 = vcombine.low %v1098, %v1102
        %v2463 = vcombine.low %v1106, %v1110
        %v2465 = vunpack.c.l.s4 1966171168
        %v2466 = vunpack.c.0.s8 %v2465
        %v2467 = vlaneseq
        %v2468 = vshrl.u32 %v2467, 7
        %v2469 = vsub.s32 %v2466, %v2468
        %v2470 = vrot.slane %v2460, %v2469
        %v2472 = vunpack.c.l.s4 1966171168
        %v2473 = vunpack.c.0.s8 %v2472
        %v2474 = vlaneseq
        %v2475 = vshrl.u32 %v2474, 7
        %v2476 = vsub.s32 %v2473, %v2475
        %v2477 = vrot.slane %v2461, %v2476
        %v2479 = vunpack.c.l.s4 1966171168
        %v2480 = vunpack.c.0.s8 %v2479
        %v2481 = vlaneseq
        %v2482 = vshrl.u32 %v2481, 7
        %v2483 = vsub.s32 %v2480, %v2482
        %v2484 = vrot.slane %v2462, %v2483
        %v2486 = vunpack.c.l.s4 1966171168
        %v2487 = vunpack.c.0.s8 %v2486
        %v2488 = vlaneseq
        %v2489 = vshrl.u32 %v2488, 7
        %v2490 = vsub.s32 %v2487, %v2489
        %v2491 = vrot.slane %v2463, %v2490
        %v2492 = vcombine.low %v2470, %v2477
        %v2493 = vcombine.low %v2484, %v2491
        %v2495 = vunpack.c.l.s4 1966171168
        %v2496 = vunpack.c.0.s8 %v2495
        %v2497 = vlaneseq
        %v2498 = vshrl.u32 %v2497, 7
        %v2499 = vsub.s32 %v2496, %v2498
        %v2500 = vrot.slane %v2492, %v2499
        %v2502 = vunpack.c.l.s4 1966171168
        %v2503 = vunpack.c.0.s8 %v2502
        %v2504 = vlaneseq
        %v2505 = vshrl.u32 %v2504, 7
        %v2506 = vsub.s32 %v2503, %v2505
        %v2507 = vrot.slane %v2493, %v2506
        %v2508 = vcombine.low %v2500, %v2507
        %v2509 = vcombine.low %v1114, %v1118
        %v2510 = vcombine.low %v1122, %v1126
        %v2511 = vcombine.low %v1130, %v1134
        %v2512 = vcombine.low %v1138, %v1142
        %v2514 = vunpack.c.l.s4 1966171168
        %v2515 = vunpack.c.0.s8 %v2514
        %v2516 = vlaneseq
        %v2517 = vshrl.u32 %v2516, 7
        %v2518 = vsub.s32 %v2515, %v2517
        %v2519 = vrot.slane %v2509, %v2518
        %v2521 = vunpack.c.l.s4 1966171168
        %v2522 = vunpack.c.0.s8 %v2521
        %v2523 = vlaneseq
        %v2524 = vshrl.u32 %v2523, 7
        %v2525 = vsub.s32 %v2522, %v2524
        %v2526 = vrot.slane %v2510, %v2525
        %v2528 = vunpack.c.l.s4 1966171168
        %v2529 = vunpack.c.0.s8 %v2528
        %v2530 = vlaneseq
        %v2531 = vshrl.u32 %v2530, 7
        %v2532 = vsub.s32 %v2529, %v2531
        %v2533 = vrot.slane %v2511, %v2532
        %v2535 = vunpack.c.l.s4 1966171168
        %v2536 = vunpack.c.0.s8 %v2535
        %v2537 = vlaneseq
        %v2538 = vshrl.u32 %v2537, 7
        %v2539 = vsub.s32 %v2536, %v2538
        %v2540 = vrot.slane %v2512, %v2539
        %v2541 = vcombine.low %v2519, %v2526
        %v2542 = vcombine.low %v2533, %v2540
        %v2544 = vunpack.c.l.s4 1966171168
        %v2545 = vunpack.c.0.s8 %v2544
        %v2546 = vlaneseq
        %v2547 = vshrl.u32 %v2546, 7
        %v2548 = vsub.s32 %v2545, %v2547
        %v2549 = vrot.slane %v2541, %v2548
        %v2551 = vunpack.c.l.s4 1966171168
        %v2552 = vunpack.c.0.s8 %v2551
        %v2553 = vlaneseq
        %v2554 = vshrl.u32 %v2553, 7
        %v2555 = vsub.s32 %v2552, %v2554
        %v2556 = vrot.slane %v2542, %v2555
        %v2557 = vcombine.low %v2549, %v2556
        %v2558 = vcombine.low %v1146, %v1150
        %v2559 = vcombine.low %v1154, %v1158
        %v2560 = vcombine.low %v1162, %v1166
        %v2561 = vcombine.low %v1170, %v1174
        %v2563 = vunpack.c.l.s4 1966171168
        %v2564 = vunpack.c.0.s8 %v2563
        %v2565 = vlaneseq
        %v2566 = vshrl.u32 %v2565, 7
        %v2567 = vsub.s32 %v2564, %v2566
        %v2568 = vrot.slane %v2558, %v2567
        %v2570 = vunpack.c.l.s4 1966171168
        %v2571 = vunpack.c.0.s8 %v2570
        %v2572 = vlaneseq
        %v2573 = vshrl.u32 %v2572, 7
        %v2574 = vsub.s32 %v2571, %v2573
        %v2575 = vrot.slane %v2559, %v2574
        %v2577 = vunpack.c.l.s4 1966171168
        %v2578 = vunpack.c.0.s8 %v2577
        %v2579 = vlaneseq
        %v2580 = vshrl.u32 %v2579, 7
        %v2581 = vsub.s32 %v2578, %v2580
        %v2582 = vrot.slane %v2560, %v2581
        %v2584 = vunpack.c.l.s4 1966171168
        %v2585 = vunpack.c.0.s8 %v2584
        %v2586 = vlaneseq
        %v2587 = vshrl.u32 %v2586, 7
        %v2588 = vsub.s32 %v2585, %v2587
        %v2589 = vrot.slane %v2561, %v2588
        %v2590 = vcombine.low %v2568, %v2575
        %v2591 = vcombine.low %v2582, %v2589
        %v2593 = vunpack.c.l.s4 1966171168
        %v2594 = vunpack.c.0.s8 %v2593
        %v2595 = vlaneseq
        %v2596 = vshrl.u32 %v2595, 7
        %v2597 = vsub.s32 %v2594, %v2596
        %v2598 = vrot.slane %v2590, %v2597
        %v2600 = vunpack.c.l.s4 1966171168
        %v2601 = vunpack.c.0.s8 %v2600
        %v2602 = vlaneseq
        %v2603 = vshrl.u32 %v2602, 7
        %v2604 = vsub.s32 %v2601, %v2603
        %v2605 = vrot.slane %v2591, %v2604
        %v2606 = vcombine.low %v2598, %v2605
        %v2607 = vcombine.low %v1178, %v1182
        %v2608 = vcombine.low %v1186, %v1190
        %v2609 = vcombine.low %v1194, %v1198
        %v2610 = vcombine.low %v1202, %v1206
        %v2612 = vunpack.c.l.s4 1966171168
        %v2613 = vunpack.c.0.s8 %v2612
        %v2614 = vlaneseq
        %v2615 = vshrl.u32 %v2614, 7
        %v2616 = vsub.s32 %v2613, %v2615
        %v2617 = vrot.slane %v2607, %v2616
        %v2619 = vunpack.c.l.s4 1966171168
        %v2620 = vunpack.c.0.s8 %v2619
        %v2621 = vlaneseq
        %v2622 = vshrl.u32 %v2621, 7
        %v2623 = vsub.s32 %v2620, %v2622
        %v2624 = vrot.slane %v2608, %v2623
        %v2626 = vunpack.c.l.s4 1966171168
        %v2627 = vunpack.c.0.s8 %v2626
        %v2628 = vlaneseq
        %v2629 = vshrl.u32 %v2628, 7
        %v2630 = vsub.s32 %v2627, %v2629
        %v2631 = vrot.slane %v2609, %v2630
        %v2633 = vunpack.c.l.s4 1966171168
        %v2634 = vunpack.c.0.s8 %v2633
        %v2635 = vlaneseq
        %v2636 = vshrl.u32 %v2635, 7
        %v2637 = vsub.s32 %v2634, %v2636
        %v2638 = vrot.slane %v2610, %v2637
        %v2639 = vcombine.low %v2617, %v2624
        %v2640 = vcombine.low %v2631, %v2638
        %v2642 = vunpack.c.l.s4 1966171168
        %v2643 = vunpack.c.0.s8 %v2642
        %v2644 = vlaneseq
        %v2645 = vshrl.u32 %v2644, 7
        %v2646 = vsub.s32 %v2643, %v2645
        %v2647 = vrot.slane %v2639, %v2646
        %v2649 = vunpack.c.l.s4 1966171168
        %v2650 = vunpack.c.0.s8 %v2649
        %v2651 = vlaneseq
        %v2652 = vshrl.u32 %v2651, 7
        %v2653 = vsub.s32 %v2650, %v2652
        %v2654 = vrot.slane %v2640, %v2653
        %v2655 = vcombine.low %v2647, %v2654
        %v2656 = vcombine.low %v1210, %v1214
        %v2657 = vcombine.low %v1218, %v1222
        %v2658 = vcombine.low %v1226, %v1230
        %v2659 = vcombine.low %v1234, %v1238
        %v2661 = vunpack.c.l.s4 1966171168
        %v2662 = vunpack.c.0.s8 %v2661
        %v2663 = vlaneseq
        %v2664 = vshrl.u32 %v2663, 7
        %v2665 = vsub.s32 %v2662, %v2664
        %v2666 = vrot.slane %v2656, %v2665
        %v2668 = vunpack.c.l.s4 1966171168
        %v2669 = vunpack.c.0.s8 %v2668
        %v2670 = vlaneseq
        %v2671 = vshrl.u32 %v2670, 7
        %v2672 = vsub.s32 %v2669, %v2671
        %v2673 = vrot.slane %v2657, %v2672
        %v2675 = vunpack.c.l.s4 1966171168
        %v2676 = vunpack.c.0.s8 %v2675
        %v2677 = vlaneseq
        %v2678 = vshrl.u32 %v2677, 7
        %v2679 = vsub.s32 %v2676, %v2678
        %v2680 = vrot.slane %v2658, %v2679
        %v2682 = vunpack.c.l.s4 1966171168
        %v2683 = vunpack.c.0.s8 %v2682
        %v2684 = vlaneseq
        %v2685 = vshrl.u32 %v2684, 7
        %v2686 = vsub.s32 %v2683, %v2685
        %v2687 = vrot.slane %v2659, %v2686
        %v2688 = vcombine.low %v2666, %v2673
        %v2689 = vcombine.low %v2680, %v2687
        %v2691 = vunpack.c.l.s4 1966171168
        %v2692 = vunpack.c.0.s8 %v2691
        %v2693 = vlaneseq
        %v2694 = vshrl.u32 %v2693, 7
        %v2695 = vsub.s32 %v2692, %v2694
        %v2696 = vrot.slane %v2688, %v2695
        %v2698 = vunpack.c.l.s4 1966171168
        %v2699 = vunpack.c.0.s8 %v2698
        %v2700 = vlaneseq
        %v2701 = vshrl.u32 %v2700, 7
        %v2702 = vsub.s32 %v2699, %v2701
        %v2703 = vrot.slane %v2689, %v2702
        %v2704 = vcombine.low %v2696, %v2703
        %v2705 = vcombine.low %v1242, %v1246
        %v2706 = vcombine.low %v1250, %v1254
        %v2707 = vcombine.low %v1258, %v1262
        %v2708 = vcombine.low %v1266, %v1270
        %v2710 = vunpack.c.l.s4 1966171168
        %v2711 = vunpack.c.0.s8 %v2710
        %v2712 = vlaneseq
        %v2713 = vshrl.u32 %v2712, 7
        %v2714 = vsub.s32 %v2711, %v2713
        %v2715 = vrot.slane %v2705, %v2714
        %v2717 = vunpack.c.l.s4 1966171168
        %v2718 = vunpack.c.0.s8 %v2717
        %v2719 = vlaneseq
        %v2720 = vshrl.u32 %v2719, 7
        %v2721 = vsub.s32 %v2718, %v2720
        %v2722 = vrot.slane %v2706, %v2721
        %v2724 = vunpack.c.l.s4 1966171168
        %v2725 = vunpack.c.0.s8 %v2724
        %v2726 = vlaneseq
        %v2727 = vshrl.u32 %v2726, 7
        %v2728 = vsub.s32 %v2725, %v2727
        %v2729 = vrot.slane %v2707, %v2728
        %v2731 = vunpack.c.l.s4 1966171168
        %v2732 = vunpack.c.0.s8 %v2731
        %v2733 = vlaneseq
        %v2734 = vshrl.u32 %v2733, 7
        %v2735 = vsub.s32 %v2732, %v2734
        %v2736 = vrot.slane %v2708, %v2735
        %v2737 = vcombine.low %v2715, %v2722
        %v2738 = vcombine.low %v2729, %v2736
        %v2740 = vunpack.c.l.s4 1966171168
        %v2741 = vunpack.c.0.s8 %v2740
        %v2742 = vlaneseq
        %v2743 = vshrl.u32 %v2742, 7
        %v2744 = vsub.s32 %v2741, %v2743
        %v2745 = vrot.slane %v2737, %v2744
        %v2747 = vunpack.c.l.s4 1966171168
        %v2748 = vunpack.c.0.s8 %v2747
        %v2749 = vlaneseq
        %v2750 = vshrl.u32 %v2749, 7
        %v2751 = vsub.s32 %v2748, %v2750
        %v2752 = vrot.slane %v2738, %v2751
        %v2753 = vcombine.low %v2745, %v2752
        %v2754 = vcombine.low %v1274, %v1278
        %v2755 = vcombine.low %v1282, %v1286
        %v2756 = vcombine.low %v1290, %v1294
        %v2757 = vcombine.low %v1298, %v1302
        %v2759 = vunpack.c.l.s4 1966171168
        %v2760 = vunpack.c.0.s8 %v2759
        %v2761 = vlaneseq
        %v2762 = vshrl.u32 %v2761, 7
        %v2763 = vsub.s32 %v2760, %v2762
        %v2764 = vrot.slane %v2754, %v2763
        %v2766 = vunpack.c.l.s4 1966171168
        %v2767 = vunpack.c.0.s8 %v2766
        %v2768 = vlaneseq
        %v2769 = vshrl.u32 %v2768, 7
        %v2770 = vsub.s32 %v2767, %v2769
        %v2771 = vrot.slane %v2755, %v2770
        %v2773 = vunpack.c.l.s4 1966171168
        %v2774 = vunpack.c.0.s8 %v2773
        %v2775 = vlaneseq
        %v2776 = vshrl.u32 %v2775, 7
        %v2777 = vsub.s32 %v2774, %v2776
        %v2778 = vrot.slane %v2756, %v2777
        %v2780 = vunpack.c.l.s4 1966171168
        %v2781 = vunpack.c.0.s8 %v2780
        %v2782 = vlaneseq
        %v2783 = vshrl.u32 %v2782, 7
        %v2784 = vsub.s32 %v2781, %v2783
        %v2785 = vrot.slane %v2757, %v2784
        %v2786 = vcombine.low %v2764, %v2771
        %v2787 = vcombine.low %v2778, %v2785
        %v2789 = vunpack.c.l.s4 1966171168
        %v2790 = vunpack.c.0.s8 %v2789
        %v2791 = vlaneseq
        %v2792 = vshrl.u32 %v2791, 7
        %v2793 = vsub.s32 %v2790, %v2792
        %v2794 = vrot.slane %v2786, %v2793
        %v2796 = vunpack.c.l.s4 1966171168
        %v2797 = vunpack.c.0.s8 %v2796
        %v2798 = vlaneseq
        %v2799 = vshrl.u32 %v2798, 7
        %v2800 = vsub.s32 %v2797, %v2799
        %v2801 = vrot.slane %v2787, %v2800
        %v2802 = vcombine.low %v2794, %v2801
        %v2803 = vcombine.low %v1306, %v1310
        %v2804 = vcombine.low %v1314, %v1318
        %v2805 = vcombine.low %v1322, %v1326
        %v2806 = vcombine.low %v1330, %v1334
        %v2808 = vunpack.c.l.s4 1966171168
        %v2809 = vunpack.c.0.s8 %v2808
        %v2810 = vlaneseq
        %v2811 = vshrl.u32 %v2810, 7
        %v2812 = vsub.s32 %v2809, %v2811
        %v2813 = vrot.slane %v2803, %v2812
        %v2815 = vunpack.c.l.s4 1966171168
        %v2816 = vunpack.c.0.s8 %v2815
        %v2817 = vlaneseq
        %v2818 = vshrl.u32 %v2817, 7
        %v2819 = vsub.s32 %v2816, %v2818
        %v2820 = vrot.slane %v2804, %v2819
        %v2822 = vunpack.c.l.s4 1966171168
        %v2823 = vunpack.c.0.s8 %v2822
        %v2824 = vlaneseq
        %v2825 = vshrl.u32 %v2824, 7
        %v2826 = vsub.s32 %v2823, %v2825
        %v2827 = vrot.slane %v2805, %v2826
        %v2829 = vunpack.c.l.s4 1966171168
        %v2830 = vunpack.c.0.s8 %v2829
        %v2831 = vlaneseq
        %v2832 = vshrl.u32 %v2831, 7
        %v2833 = vsub.s32 %v2830, %v2832
        %v2834 = vrot.slane %v2806, %v2833
        %v2835 = vcombine.low %v2813, %v2820
        %v2836 = vcombine.low %v2827, %v2834
        %v2838 = vunpack.c.l.s4 1966171168
        %v2839 = vunpack.c.0.s8 %v2838
        %v2840 = vlaneseq
        %v2841 = vshrl.u32 %v2840, 7
        %v2842 = vsub.s32 %v2839, %v2841
        %v2843 = vrot.slane %v2835, %v2842
        %v2845 = vunpack.c.l.s4 1966171168
        %v2846 = vunpack.c.0.s8 %v2845
        %v2847 = vlaneseq
        %v2848 = vshrl.u32 %v2847, 7
        %v2849 = vsub.s32 %v2846, %v2848
        %v2850 = vrot.slane %v2836, %v2849
        %v2851 = vcombine.low %v2843, %v2850
        %v2852 = vcombine.low %v1338, %v1342
        %v2853 = vcombine.low %v1346, %v1350
        %v2854 = vcombine.low %v1354, %v1358
        %v2855 = vcombine.low %v1362, %v1366
        %v2857 = vunpack.c.l.s4 1966171168
        %v2858 = vunpack.c.0.s8 %v2857
        %v2859 = vlaneseq
        %v2860 = vshrl.u32 %v2859, 7
        %v2861 = vsub.s32 %v2858, %v2860
        %v2862 = vrot.slane %v2852, %v2861
        %v2864 = vunpack.c.l.s4 1966171168
        %v2865 = vunpack.c.0.s8 %v2864
        %v2866 = vlaneseq
        %v2867 = vshrl.u32 %v2866, 7
        %v2868 = vsub.s32 %v2865, %v2867
        %v2869 = vrot.slane %v2853, %v2868
        %v2871 = vunpack.c.l.s4 1966171168
        %v2872 = vunpack.c.0.s8 %v2871
        %v2873 = vlaneseq
        %v2874 = vshrl.u32 %v2873, 7
        %v2875 = vsub.s32 %v2872, %v2874
        %v2876 = vrot.slane %v2854, %v2875
        %v2878 = vunpack.c.l.s4 1966171168
        %v2879 = vunpack.c.0.s8 %v2878
        %v2880 = vlaneseq
        %v2881 = vshrl.u32 %v2880, 7
        %v2882 = vsub.s32 %v2879, %v2881
        %v2883 = vrot.slane %v2855, %v2882
        %v2884 = vcombine.low %v2862, %v2869
        %v2885 = vcombine.low %v2876, %v2883
        %v2887 = vunpack.c.l.s4 1966171168
        %v2888 = vunpack.c.0.s8 %v2887
        %v2889 = vlaneseq
        %v2890 = vshrl.u32 %v2889, 7
        %v2891 = vsub.s32 %v2888, %v2890
        %v2892 = vrot.slane %v2884, %v2891
        %v2894 = vunpack.c.l.s4 1966171168
        %v2895 = vunpack.c.0.s8 %v2894
        %v2896 = vlaneseq
        %v2897 = vshrl.u32 %v2896, 7
        %v2898 = vsub.s32 %v2895, %v2897
        %v2899 = vrot.slane %v2885, %v2898
        %v2900 = vcombine.low %v2892, %v2899
        %v2901 = vcombine.low %v1370, %v1374
        %v2902 = vcombine.low %v1378, %v1382
        %v2903 = vcombine.low %v1386, %v1390
        %v2904 = vcombine.low %v1394, %v1398
        %v2906 = vunpack.c.l.s4 1966171168
        %v2907 = vunpack.c.0.s8 %v2906
        %v2908 = vlaneseq
        %v2909 = vshrl.u32 %v2908, 7
        %v2910 = vsub.s32 %v2907, %v2909
        %v2911 = vrot.slane %v2901, %v2910
        %v2913 = vunpack.c.l.s4 1966171168
        %v2914 = vunpack.c.0.s8 %v2913
        %v2915 = vlaneseq
        %v2916 = vshrl.u32 %v2915, 7
        %v2917 = vsub.s32 %v2914, %v2916
        %v2918 = vrot.slane %v2902, %v2917
        %v2920 = vunpack.c.l.s4 1966171168
        %v2921 = vunpack.c.0.s8 %v2920
        %v2922 = vlaneseq
        %v2923 = vshrl.u32 %v2922, 7
        %v2924 = vsub.s32 %v2921, %v2923
        %v2925 = vrot.slane %v2903, %v2924
        %v2927 = vunpack.c.l.s4 1966171168
        %v2928 = vunpack.c.0.s8 %v2927
        %v2929 = vlaneseq
        %v2930 = vshrl.u32 %v2929, 7
        %v2931 = vsub.s32 %v2928, %v2930
        %v2932 = vrot.slane %v2904, %v2931
        %v2933 = vcombine.low %v2911, %v2918
        %v2934 = vcombine.low %v2925, %v2932
        %v2936 = vunpack.c.l.s4 1966171168
        %v2937 = vunpack.c.0.s8 %v2936
        %v2938 = vlaneseq
        %v2939 = vshrl.u32 %v2938, 7
        %v2940 = vsub.s32 %v2937, %v2939
        %v2941 = vrot.slane %v2933, %v2940
        %v2943 = vunpack.c.l.s4 1966171168
        %v2944 = vunpack.c.0.s8 %v2943
        %v2945 = vlaneseq
        %v2946 = vshrl.u32 %v2945, 7
        %v2947 = vsub.s32 %v2944, %v2946
        %v2948 = vrot.slane %v2934, %v2947
        %v2949 = vcombine.low %v2941, %v2948
        %v2950 = vcombine.low %v1402, %v1406
        %v2951 = vcombine.low %v1410, %v1414
        %v2952 = vcombine.low %v1418, %v1422
        %v2953 = vcombine.low %v1426, %v1430
        %v2955 = vunpack.c.l.s4 1966171168
        %v2956 = vunpack.c.0.s8 %v2955
        %v2957 = vlaneseq
        %v2958 = vshrl.u32 %v2957, 7
        %v2959 = vsub.s32 %v2956, %v2958
        %v2960 = vrot.slane %v2950, %v2959
        %v2962 = vunpack.c.l.s4 1966171168
        %v2963 = vunpack.c.0.s8 %v2962
        %v2964 = vlaneseq
        %v2965 = vshrl.u32 %v2964, 7
        %v2966 = vsub.s32 %v2963, %v2965
        %v2967 = vrot.slane %v2951, %v2966
        %v2969 = vunpack.c.l.s4 1966171168
        %v2970 = vunpack.c.0.s8 %v2969
        %v2971 = vlaneseq
        %v2972 = vshrl.u32 %v2971, 7
        %v2973 = vsub.s32 %v2970, %v2972
        %v2974 = vrot.slane %v2952, %v2973
        %v2976 = vunpack.c.l.s4 1966171168
        %v2977 = vunpack.c.0.s8 %v2976
        %v2978 = vlaneseq
        %v2979 = vshrl.u32 %v2978, 7
        %v2980 = vsub.s32 %v2977, %v2979
        %v2981 = vrot.slane %v2953, %v2980
        %v2982 = vcombine.low %v2960, %v2967
        %v2983 = vcombine.low %v2974, %v2981
        %v2985 = vunpack.c.l.s4 1966171168
        %v2986 = vunpack.c.0.s8 %v2985
        %v2987 = vlaneseq
        %v2988 = vshrl.u32 %v2987, 7
        %v2989 = vsub.s32 %v2986, %v2988
        %v2990 = vrot.slane %v2982, %v2989
        %v2992 = vunpack.c.l.s4 1966171168
        %v2993 = vunpack.c.0.s8 %v2992
        %v2994 = vlaneseq
        %v2995 = vshrl.u32 %v2994, 7
        %v2996 = vsub.s32 %v2993, %v2995
        %v2997 = vrot.slane %v2983, %v2996
        %v2998 = vcombine.low %v2990, %v2997
        %2999 = vset.pattern.permute.xlu0 0
        %3000 = vperm.xlu0 %2999, %v1479
        %v3001 = vpop.permute.xlu0 %3000
        %3002 = vset.pattern.permute.xlu0 0
        %3003 = vperm.xlu0 %3002, %v1528
        %v3004 = vpop.permute.xlu0 %3003
        %3005 = vset.pattern.permute.xlu0 0
        %3006 = vperm.xlu0 %3005, %v1577
        %v3007 = vpop.permute.xlu0 %3006
        %3008 = vset.pattern.permute.xlu0 0
        %3009 = vperm.xlu0 %3008, %v1626
        %v3010 = vpop.permute.xlu0 %3009
        %3011 = vset.pattern.permute.xlu0 0
        %3012 = vperm.xlu0 %3011, %v1675
        %v3013 = vpop.permute.xlu0 %3012
        %3014 = vset.pattern.permute.xlu0 0
        %3015 = vperm.xlu0 %3014, %v1724
        %v3016 = vpop.permute.xlu0 %3015
        %3017 = vset.pattern.permute.xlu0 0
        %3018 = vperm.xlu0 %3017, %v1773
        %v3019 = vpop.permute.xlu0 %3018
        %3020 = vset.pattern.permute.xlu0 0
        %3021 = vperm.xlu0 %3020, %v1822
        %v3022 = vpop.permute.xlu0 %3021
        %3023 = vset.pattern.permute.xlu0 0
        %3024 = vperm.xlu0 %3023, %v1871
        %v3025 = vpop.permute.xlu0 %3024
        %3026 = vset.pattern.permute.xlu0 0
        %3027 = vperm.xlu0 %3026, %v1920
        %v3028 = vpop.permute.xlu0 %3027
        %3029 = vset.pattern.permute.xlu0 0
        %3030 = vperm.xlu0 %3029, %v1969
        %v3031 = vpop.permute.xlu0 %3030
        %3032 = vset.pattern.permute.xlu0 0
        %3033 = vperm.xlu0 %3032, %v2018
        %v3034 = vpop.permute.xlu0 %3033
        %3035 = vset.pattern.permute.xlu0 0
        %3036 = vperm.xlu0 %3035, %v2067
        %v3037 = vpop.permute.xlu0 %3036
        %3038 = vset.pattern.permute.xlu0 0
        %3039 = vperm.xlu0 %3038, %v2116
        %v3040 = vpop.permute.xlu0 %3039
        %3041 = vset.pattern.permute.xlu0 0
        %3042 = vperm.xlu0 %3041, %v2165
        %v3043 = vpop.permute.xlu0 %3042
        %3044 = vset.pattern.permute.xlu0 0
        %3045 = vperm.xlu0 %3044, %v2214
        %v3046 = vpop.permute.xlu0 %3045
        %3047 = vset.pattern.permute.xlu0 0
        %3048 = vperm.xlu0 %3047, %v2263
        %v3049 = vpop.permute.xlu0 %3048
        %3050 = vset.pattern.permute.xlu0 0
        %3051 = vperm.xlu0 %3050, %v2312
        %v3052 = vpop.permute.xlu0 %3051
        %3053 = vset.pattern.permute.xlu0 0
        %3054 = vperm.xlu0 %3053, %v2361
        %v3055 = vpop.permute.xlu0 %3054
        %3056 = vset.pattern.permute.xlu0 0
        %3057 = vperm.xlu0 %3056, %v2410
        %v3058 = vpop.permute.xlu0 %3057
        %3059 = vset.pattern.permute.xlu0 0
        %3060 = vperm.xlu0 %3059, %v2459
        %v3061 = vpop.permute.xlu0 %3060
        %3062 = vset.pattern.permute.xlu0 0
        %3063 = vperm.xlu0 %3062, %v2508
        %v3064 = vpop.permute.xlu0 %3063
        %3065 = vset.pattern.permute.xlu0 0
        %3066 = vperm.xlu0 %3065, %v2557
        %v3067 = vpop.permute.xlu0 %3066
        %3068 = vset.pattern.permute.xlu0 0
        %3069 = vperm.xlu0 %3068, %v2606
        %v3070 = vpop.permute.xlu0 %3069
        %3071 = vset.pattern.permute.xlu0 0
        %3072 = vperm.xlu0 %3071, %v2655
        %v3073 = vpop.permute.xlu0 %3072
        %3074 = vset.pattern.permute.xlu0 0
        %3075 = vperm.xlu0 %3074, %v2704
        %v3076 = vpop.permute.xlu0 %3075
        %3077 = vset.pattern.permute.xlu0 0
        %3078 = vperm.xlu0 %3077, %v2753
        %v3079 = vpop.permute.xlu0 %3078
        %3080 = vset.pattern.permute.xlu0 0
        %3081 = vperm.xlu0 %3080, %v2802
        %v3082 = vpop.permute.xlu0 %3081
        %3083 = vset.pattern.permute.xlu0 0
        %3084 = vperm.xlu0 %3083, %v2851
        %v3085 = vpop.permute.xlu0 %3084
        %3086 = vset.pattern.permute.xlu0 0
        %3087 = vperm.xlu0 %3086, %v2900
        %v3088 = vpop.permute.xlu0 %3087
        %3089 = vset.pattern.permute.xlu0 0
        %3090 = vperm.xlu0 %3089, %v2949
        %v3091 = vpop.permute.xlu0 %3090
        %3092 = vset.pattern.permute.xlu0 0
        %3093 = vperm.xlu0 %3092, %v2998
        %v3094 = vpop.permute.xlu0 %3093
        %v3095 = vlaneseq
        %v3096 = vand.u32 %v3095, 127
        %v3097 = vlaneseq
        %v3098 = vshrl.u32 %v3097, 7
        %v3099 = vsub.s32 %v3096, %v3098
        %v3100 = vrot.slane %v3001, %v3099
        %v3101 = vadd.s32 %v3096, 4294967288
        %v3102 = vlaneseq
        %v3103 = vshrl.u32 %v3102, 7
        %v3104 = vsub.s32 %v3101, %v3103
        %v3105 = vrot.slane %v3004, %v3104
        %vm3106 = vcmask 130112
        %v3107 = vsel %vm3106, %v3105, %v3100
        %v3108 = vadd.s32 %v3096, 4294967280
        %v3109 = vlaneseq
        %v3110 = vshrl.u32 %v3109, 7
        %v3111 = vsub.s32 %v3108, %v3110
        %v3112 = vrot.slane %v3007, %v3111
        %vm3113 = vcmask 195712
        %v3114 = vsel %vm3113, %v3112, %v3107
        %v3115 = vadd.s32 %v3096, 4294967272
        %v3116 = vlaneseq
        %v3117 = vshrl.u32 %v3116, 7
        %v3118 = vsub.s32 %v3115, %v3117
        %v3119 = vrot.slane %v3010, %v3118
        %vm3120 = vcmask 261312
        %v3121 = vsel %vm3120, %v3119, %v3114
        %v3122 = vadd.s32 %v3096, 4294967264
        %v3123 = vlaneseq
        %v3124 = vshrl.u32 %v3123, 7
        %v3125 = vsub.s32 %v3122, %v3124
        %v3126 = vrot.slane %v3013, %v3125
        %vm3127 = vcmask 326912
        %v3128 = vsel %vm3127, %v3126, %v3121
        %v3129 = vadd.s32 %v3096, 4294967256
        %v3130 = vlaneseq
        %v3131 = vshrl.u32 %v3130, 7
        %v3132 = vsub.s32 %v3129, %v3131
        %v3133 = vrot.slane %v3016, %v3132
        %vm3134 = vcmask 392512
        %v3135 = vsel %vm3134, %v3133, %v3128
        %v3136 = vadd.s32 %v3096, 4294967248
        %v3137 = vlaneseq
        %v3138 = vshrl.u32 %v3137, 7
        %v3139 = vsub.s32 %v3136, %v3138
        %v3140 = vrot.slane %v3019, %v3139
        %vm3141 = vcmask 458112
        %v3142 = vsel %vm3141, %v3140, %v3135
        %v3143 = vadd.s32 %v3096, 4294967240
        %v3144 = vlaneseq
        %v3145 = vshrl.u32 %v3144, 7
        %v3146 = vsub.s32 %v3143, %v3145
        %v3147 = vrot.slane %v3022, %v3146
        %vm3148 = vcmask 523712
        %v3149 = vsel %vm3148, %v3147, %v3142
        %v3150 = vadd.s32 %v3096, 4294967232
        %v3151 = vlaneseq
        %v3152 = vshrl.u32 %v3151, 7
        %v3153 = vsub.s32 %v3150, %v3152
        %v3154 = vrot.slane %v3025, %v3153
        %vm3155 = vcmask 589312
        %v3156 = vsel %vm3155, %v3154, %v3149
        %v3157 = vadd.s32 %v3096, 4294967224
        %v3158 = vlaneseq
        %v3159 = vshrl.u32 %v3158, 7
        %v3160 = vsub.s32 %v3157, %v3159
        %v3161 = vrot.slane %v3028, %v3160
        %vm3162 = vcmask 654912
        %v3163 = vsel %vm3162, %v3161, %v3156
        %v3164 = vadd.s32 %v3096, 4294967216
        %v3165 = vlaneseq
        %v3166 = vshrl.u32 %v3165, 7
        %v3167 = vsub.s32 %v3164, %v3166
        %v3168 = vrot.slane %v3031, %v3167
        %vm3169 = vcmask 720512
        %v3170 = vsel %vm3169, %v3168, %v3163
        %v3171 = vadd.s32 %v3096, 4294967208
        %v3172 = vlaneseq
        %v3173 = vshrl.u32 %v3172, 7
        %v3174 = vsub.s32 %v3171, %v3173
        %v3175 = vrot.slane %v3034, %v3174
        %vm3176 = vcmask 786112
        %v3177 = vsel %vm3176, %v3175, %v3170
        %v3178 = vadd.s32 %v3096, 4294967200
        %v3179 = vlaneseq
        %v3180 = vshrl.u32 %v3179, 7
        %v3181 = vsub.s32 %v3178, %v3180
        %v3182 = vrot.slane %v3037, %v3181
        %vm3183 = vcmask 851712
        %v3184 = vsel %vm3183, %v3182, %v3177
        %v3185 = vadd.s32 %v3096, 4294967192
        %v3186 = vlaneseq
        %v3187 = vshrl.u32 %v3186, 7
        %v3188 = vsub.s32 %v3185, %v3187
        %v3189 = vrot.slane %v3040, %v3188
        %vm3190 = vcmask 917312
        %v3191 = vsel %vm3190, %v3189, %v3184
        %v3192 = vadd.s32 %v3096, 4294967184
        %v3193 = vlaneseq
        %v3194 = vshrl.u32 %v3193, 7
        %v3195 = vsub.s32 %v3192, %v3194
        %v3196 = vrot.slane %v3043, %v3195
        %vm3197 = vcmask 982912
        %v3198 = vsel %vm3197, %v3196, %v3191
        %v3199 = vadd.s32 %v3096, 4294967176
        %v3200 = vlaneseq
        %v3201 = vshrl.u32 %v3200, 7
        %v3202 = vsub.s32 %v3199, %v3201
        %v3203 = vrot.slane %v3046, %v3202
        %vm3204 = vcmask 1048512
        %v3205 = vsel %vm3204, %v3203, %v3198
        %v3206 = vlaneseq
        %v3207 = vshrl.u32 %v3206, 7
        %v3208 = vsub.s32 %v3096, %v3207
        %v3209 = vrot.slane %v3049, %v3208
        %v3210 = vlaneseq
        %v3211 = vshrl.u32 %v3210, 7
        %v3212 = vsub.s32 %v3101, %v3211
        %v3213 = vrot.slane %v3052, %v3212
        %v3214 = vsel %vm3106, %v3213, %v3209
        %v3215 = vlaneseq
        %v3216 = vshrl.u32 %v3215, 7
        %v3217 = vsub.s32 %v3108, %v3216
        %v3218 = vrot.slane %v3055, %v3217
        %v3219 = vsel %vm3113, %v3218, %v3214
        %v3220 = vlaneseq
        %v3221 = vshrl.u32 %v3220, 7
        %v3222 = vsub.s32 %v3115, %v3221
        %v3223 = vrot.slane %v3058, %v3222
        %v3224 = vsel %vm3120, %v3223, %v3219
        %v3225 = vlaneseq
        %v3226 = vshrl.u32 %v3225, 7
        %v3227 = vsub.s32 %v3122, %v3226
        %v3228 = vrot.slane %v3061, %v3227
        %v3229 = vsel %vm3127, %v3228, %v3224
        %v3230 = vlaneseq
        %v3231 = vshrl.u32 %v3230, 7
        %v3232 = vsub.s32 %v3129, %v3231
        %v3233 = vrot.slane %v3064, %v3232
        %v3234 = vsel %vm3134, %v3233, %v3229
        %v3235 = vlaneseq
        %v3236 = vshrl.u32 %v3235, 7
        %v3237 = vsub.s32 %v3136, %v3236
        %v3238 = vrot.slane %v3067, %v3237
        %v3239 = vsel %vm3141, %v3238, %v3234
        %v3240 = vlaneseq
        %v3241 = vshrl.u32 %v3240, 7
        %v3242 = vsub.s32 %v3143, %v3241
        %v3243 = vrot.slane %v3070, %v3242
        %v3244 = vsel %vm3148, %v3243, %v3239
        %v3245 = vlaneseq
        %v3246 = vshrl.u32 %v3245, 7
        %v3247 = vsub.s32 %v3150, %v3246
        %v3248 = vrot.slane %v3073, %v3247
        %v3249 = vsel %vm3155, %v3248, %v3244
        %v3250 = vlaneseq
        %v3251 = vshrl.u32 %v3250, 7
        %v3252 = vsub.s32 %v3157, %v3251
        %v3253 = vrot.slane %v3076, %v3252
        %v3254 = vsel %vm3162, %v3253, %v3249
        %v3255 = vlaneseq
        %v3256 = vshrl.u32 %v3255, 7
        %v3257 = vsub.s32 %v3164, %v3256
        %v3258 = vrot.slane %v3079, %v3257
        %v3259 = vsel %vm3169, %v3258, %v3254
        %v3260 = vlaneseq
        %v3261 = vshrl.u32 %v3260, 7
        %v3262 = vsub.s32 %v3171, %v3261
        %v3263 = vrot.slane %v3082, %v3262
        %v3264 = vsel %vm3176, %v3263, %v3259
        %v3265 = vlaneseq
        %v3266 = vshrl.u32 %v3265, 7
        %v3267 = vsub.s32 %v3178, %v3266
        %v3268 = vrot.slane %v3085, %v3267
        %v3269 = vsel %vm3183, %v3268, %v3264
        %v3270 = vlaneseq
        %v3271 = vshrl.u32 %v3270, 7
        %v3272 = vsub.s32 %v3185, %v3271
        %v3273 = vrot.slane %v3088, %v3272
        %v3274 = vsel %vm3190, %v3273, %v3269
        %v3275 = vlaneseq
        %v3276 = vshrl.u32 %v3275, 7
        %v3277 = vsub.s32 %v3192, %v3276
        %v3278 = vrot.slane %v3091, %v3277
        %v3279 = vsel %vm3197, %v3278, %v3274
        %v3280 = vlaneseq
        %v3281 = vshrl.u32 %v3280, 7
        %v3282 = vsub.s32 %v3199, %v3281
        %v3283 = vrot.slane %v3094, %v3282
        %v3284 = vsel %vm3204, %v3283, %v3279
        %v3285 = vcombine.low %v3205, %v3284
        %v3287 = vunpack.c.l.s4 1966171168
        %v3288 = vunpack.c.0.s8 %v3287
        %v3289 = vlaneseq
        %v3290 = vshrl.u32 %v3289, 7
        %v3291 = vsub.s32 %v3288, %v3290
        %v3292 = vrot.slane %v3285, %v3291
        %v3294 = vunpack.c.l.s4 1966171168
        %v3295 = vunpack.c.0.s8 %v3294
        %v3296 = vlaneseq
        %v3297 = vshrl.u32 %v3296, 7
        %v3298 = vsub.s32 %v3295, %v3297
        %v3299 = vrot.slane %v3292, %v3298
        %v3301 = vlaneseq
        %vm3302 = vcmp.ge.s32.totalorder %v3301, 0
        %vm3303 = vcmp.lt.s32.totalorder %v3301, 256
        %vm3304 = vmand %vm3302, %vm3303
        %3305 = vst.msk [vmem:[%s165] sm:$0x3] %vm3304, %v3299
        %s3306 = sand.u32 %s94, 1
        %s3307 = scalar_lea.sflag [#allocation4], %s3306
        %s3308 = sand.u32 %s94, 1
        %s3309 = smul.addr %s3308, 2
        %s3310 = scalar_lea.vmem [#allocation3], %s3309
        // Predicated region
        $region33: #{tpu_custom_call.1} parent=31 // pred_check
          %p3311 = pneg %p104
        $region34: #{tpu_custom_call.1} parent=31 // pred_check_branch
          %3313 = sbr.rel (%p3311) target = $region36
        $region35: #{tpu_custom_call.1} parent=31 // pred_region
          %s3314 = smul.u32 2, %s18
          %s3316 = ssub.s32 32, 32
          %3317 = vsyncadd %s3307, %s3316
          %s3318 = smul.addr %s3314, 16
          %s3319 = scalar_lea.hbm %s3, %s3318
          %s3321 = sshll.u32 %s3310, 4
          %s3322 = int_to_ptr.vmem [resolvable:$true] %s3321
          %3324 = dma.vmem_to_hbm [thread:$0]  %s3322, 32, %s3319, %s3307
        $region36: #{tpu_custom_call.1} parent=31 // pred_fallthru
          _
      $region32: #{tpu_custom_call.1} parent=5 // pred_fallthru
        _
      %p3325 = scmp.le.s32.totalorder 2, %s13
      // Predicated region
      $region37: #{tpu_custom_call.1} parent=5 // pred_check
        %p3326 = pneg %p3325
      $region38: #{tpu_custom_call.1} parent=5 // pred_check_branch
        %3328 = sbr.rel (%p3326) target = $region40
      $region39: #{tpu_custom_call.1} parent=5 // pred_region
        %s3329 = ssub.s32 %s13, 2
        // Predicated region
        $region41: #{tpu_custom_call.1} parent=39 // pred_check
          %p3330 = pneg %p110
        $region42: #{tpu_custom_call.1} parent=39 // pred_check_branch
          %3332 = sbr.rel (%p3330) target = $region44
        $region43: #{tpu_custom_call.1} parent=39 // pred_region
          %s3333 = sand.u32 %s95, 1
          %s3334 = scalar_lea.sflag [#allocation4], %s3333
          %s3335 = sand.u32 %s95, 1
          %s3336 = smul.addr %s3335, 2
          %s3337 = scalar_lea.vmem [#allocation3], %s3336
          %3338 = dma.done %s3334, 32
        $region44: #{tpu_custom_call.1} parent=39 // pred_fallthru
          _
      $region40: #{tpu_custom_call.1} parent=5 // pred_fallthru
        _
    $region6: #{tpu_custom_call.1} parent=1 // loop_footer
      %s17 = sadd.s32 1, %s13
    $region7: #{tpu_custom_call.1} parent=1 // loop_footer_branch
      %12 = sbr.rel target = $region3
    $region8: #{tpu_custom_call.1} parent=1 // loop_exit
      _
    %3339 = vsyncpa [#allocation4], 1
    %s3340 = scalar_lea.sflag [#allocation4], 1
    %3341 = vsyncpa %s3340, 1

</llo_original>
